<compile_context>
chip_gen: v5e
topology: v5e:2x2
jax: 0.10.0
libtpu: 0.0.40
codegen_flags: <defaults>
</compile_context>

<pallas_src>
import jax
import jax.numpy as jnp
from jax.experimental import pallas as pl
from jax.experimental.pallas import tpu as pltpu

_MIB = 1024 * 1024


def _s2d_conv_strip_kernel(x_ref, top_ref, bot_ref, w_ref, o_ref, pad_ref):
    """3x3 conv (as matmul) on one zero-haloed row-strip of the s2d image.

    x_ref:   (1, TH, W2, C4)   bf16 strip of the s2d image (channels on lanes)
    top_ref: (1, 1, W2, C4)    row above the strip (clamped at the image edge)
    bot_ref: (1, 1, W2, C4)    row below the strip (clamped at the image edge)
    w_ref:   (9*C4, N)         im2col-ordered bf16 weights
    o_ref:   (1, TH, W2, N)    output strip, channels already in PixelUnshuffle order
    pad_ref: (TH+2, W2+2, C4)  VMEM scratch: zero-haloed strip
    """
    _, TH, W2, C4 = x_ref.shape
    N = o_ref.shape[-1]
    cdt = pad_ref.dtype

    s = pl.program_id(1)
    n_strips = pl.num_programs(1)

    # ---- assemble the zero-haloed strip --------------------------------
    # Left/right halo columns are always zero; only these thin slabs are
    # written (no full-scratch zeroing), keeping vst traffic minimal.
    zero_col = jnp.zeros((TH + 2, 1, C4), cdt)
    pad_ref[:, 0:1, :] = zero_col
    pad_ref[:, W2 + 1:W2 + 2, :] = zero_col

    # Interior rows come from the auto-pipelined BlockSpec strip.
    pad_ref[1:TH + 1, 1:W2 + 1, :] = x_ref[0]

    # Top / bottom halo rows: neighbor rows for interior strips, zeros at the
    # image boundary (exactly one branch of each pair runs; regions written by
    # the two branches never overlap with other writes this iteration).
    @pl.when(s > 0)
    def _():
        pad_ref[0:1, 1:W2 + 1, :] = top_ref[0]

    @pl.when(s == 0)
    def _():
        pad_ref[0:1, 1:W2 + 1, :] = jnp.zeros((1, W2, C4), cdt)

    @pl.when(s < n_strips - 1)
    def _():
        pad_ref[TH + 1:TH + 2, 1:W2 + 1, :] = bot_ref[0]

    @pl.when(s == n_strips - 1)
    def _():
        pad_ref[TH + 1:TH + 2, 1:W2 + 1, :] = jnp.zeros((1, W2, C4), cdt)

    # ---- im2col + MXU matmul (bf16 operands, f32 accumulation) ---------
    if C4 >= 128:
        # Channels already fill the MXU K dimension: accumulate one matmul per
        # kernel row (K = 3*C4) instead of materializing the full 9*C4-wide
        # patch matrix (3x smaller im2col temps, less vst pressure).
        acc = None
        for oy in range(3):
            slab = jnp.concatenate(
                [pad_ref[oy:oy + TH, ox:ox + W2, :] for ox in range(3)],
                axis=-1).reshape(TH * W2, 3 * C4)
            part = jnp.dot(slab, w_ref[oy * 3 * C4:(oy + 1) * 3 * C4, :],
                           preferred_element_type=jnp.float32)
            acc = part if acc is None else acc + part
    else:
        # Small C4 (toy shapes, n_feat < 32): a single big-K matmul keeps the
        # MXU fed; lanes are partially empty so toy timings are not
        # representative of real model widths.
        taps = [pad_ref[oy:oy + TH, ox:ox + W2, :]
                for oy in range(3) for ox in range(3)]
        patches = jnp.concatenate(taps, axis=-1).reshape(TH * W2, 9 * C4)
        acc = jnp.dot(patches, w_ref[...], preferred_element_type=jnp.float32)

    # NOTE: N = 2*n_feat may be < 128 -> masked partial stores; see the
    # NCHW-direct TODO at module top for the lane-dense alternative.
    o_ref[0] = acc.reshape(TH, W2, N).astype(o_ref.dtype)


def _s2d_weight(w_oihw):
    """(Cout, Cin, 3, 3) conv weight -> (9*4*Cin, 4*Cout) s2d/im2col matrix.

    Row index  k = (oy*3 + ox)*4*Cin + (ry*2 + rx)*Cin + ci  matches the
    kernel's tap order and the wrapper's s2d channel order.
    Column     n = c*4 + dy*2 + dx  is exactly PixelUnshuffle(2) order.
    """
    Cout, Cin, _, _ = w_oihw.shape
    w6 = jnp.zeros((3, 3, 2, 2, Cin, Cout, 2, 2), w_oihw.dtype)
    for dy in range(2):
        for ky in range(3):
            ty = dy + ky - 1                 # original row offset, in [-1, 2]
            oy, ry = ty // 2 + 1, ty % 2     # s2d tap index / sub-row parity
            for dx in range(2):
                for kx in range(3):
                    tx = dx + kx - 1
                    ox, rx = tx // 2 + 1, tx % 2
                    w6 = w6.at[oy, ox, ry, rx, :, :, dy, dx].set(
                        jnp.transpose(w_oihw[:, :, ky, kx]))
    return w6.reshape(9 * 4 * Cin, 4 * Cout)


def _vmem_limit_and_budget():
    """Per-generation scoped-VMEM limit and working-set budget (bytes)."""
    try:
        cap = int(pltpu.get_tpu_info().vmem_capacity_bytes)  # 64 MiB v7x, 128 MiB v5e/v6e
    except Exception:
        cap = 64 * _MIB                                      # conservative fallback
    limit = max(32 * _MIB, min(cap - 16 * _MIB, 96 * _MIB))  # v7x ~48 MiB, v5e/v6e ~96 MiB
    return limit, limit - 8 * _MIB


def _strip_vmem_bytes(TH, W2, C4, N, in_item, out_item):
    """Rough per-strip VMEM working set."""
    px = TH * W2
    slab_w = (3 if C4 >= 128 else 9) * C4
    return (2 * px * C4 * in_item                  # input strip (double-buffered)
            + 4 * W2 * C4 * in_item                # halo-row blocks (double-buffered)
            + (TH + 2) * (W2 + 2) * C4 * in_item   # haloed scratch
            + px * slab_w * in_item                # im2col slab
            + px * N * 4                           # f32 accumulator
            + 2 * px * N * out_item)               # output strip (double-buffered)


def _pick_strip_height(B, H2, W2, C4, N, in_item, out_item, budget):
    """Largest divisor of H2 whose working set fits the budget, preferring
    >= 2 total grid steps so both v7x TensorCores get work."""
    divisors = sorted((d for d in range(1, H2 + 1) if H2 % d == 0), reverse=True)
    for th in divisors:
        if th > 1 and B * (H2 // th) < 2:
            continue
        if _strip_vmem_bytes(th, W2, C4, N, in_item, out_item) <= budget:
            return th
    # TODO(synk): tile W as well when even a single-row strip overflows VMEM.
    return divisors[-1]


def downsample(x_nchw, w_oihw, *, compute_dtype=jnp.bfloat16):
    """Downsample.forward: conv3x3 (bias=False, pad=1) + PixelUnshuffle(2).

    conv+unshuffle is algebraically a 3x3 conv on the space-to-depth input
    (2x2 spatial -> channels): one matmul per strip with K = 9*4*Cin whose
    output channels are already in PixelUnshuffle order.
    """
    B, C, H, W = x_nchw.shape
    Cout = w_oihw.shape[0]                        # = C // 2
    assert w_oihw.shape == (Cout, C, 3, 3)
    assert H % 2 == 0 and W % 2 == 0
    H2, W2 = H // 2, W // 2
    C4, N, K = 4 * C, 4 * Cout, 36 * C

    out_dtype = x_nchw.dtype
    out_item = jnp.dtype(out_dtype).itemsize
    in_item = jnp.dtype(compute_dtype).itemsize

    # Layout prep: one transpose-copy to s2d NHWC + bf16 cast.
    # TODO(synk): fold this into per-strip strided DMAs from the NCHW input.
    xs = x_nchw.reshape(B, C, H2, 2, W2, 2)
    xs = jnp.transpose(xs, (0, 2, 4, 3, 5, 1)).reshape(B, H2, W2, C4)
    xs = xs.astype(compute_dtype)
    w_mat = _s2d_weight(w_oihw).astype(compute_dtype)

    vmem_limit, budget = _vmem_limit_and_budget()
    TH = _pick_strip_height(B, H2, W2, C4, N, in_item, out_item, budget)
    n_strips = H2 // TH

    cost = pl.CostEstimate(
        flops=2 * B * H2 * W2 * K * N,
        transcendentals=0,
        bytes_accessed=(xs.size * in_item + K * N * in_item
                        + B * H2 * W2 * N * out_item))

    y = pl.pallas_call(
        _s2d_conv_strip_kernel,
        out_shape=jax.ShapeDtypeStruct((B, H2, W2, N), out_dtype),
        grid=(B, n_strips),
        in_specs=[
            # main strip (auto-pipelined)
            pl.BlockSpec((1, TH, W2, C4), lambda b, s: (b, s, 0, 0)),
            # halo rows above/below the strip (clamped at image edges; the
            # kernel substitutes zeros there)
            pl.BlockSpec((1, 1, W2, C4),
                         lambda b, s: (b, jnp.maximum(s * TH - 1, 0), 0, 0)),
            pl.BlockSpec((1, 1, W2, C4),
                         lambda b, s: (b, jnp.minimum((s + 1) * TH, H2 - 1), 0, 0)),
            # im2col weight matrix, resident across the grid
            pl.BlockSpec((K, N), lambda b, s: (0, 0)),
        ],
        out_specs=pl.BlockSpec((1, TH, W2, N), lambda b, s: (b, s, 0, 0)),
        scratch_shapes=[pltpu.VMEM((TH + 2, W2 + 2, C4), compute_dtype)],
        compiler_params=pltpu.CompilerParams(
            dimension_semantics=("parallel", "parallel"),
            vmem_limit_bytes=int(vmem_limit)),
        cost_estimate=cost,
    )(xs, xs, xs, w_mat)

    # Only remaining layout op: NHWC -> NCHW (see NCHW-direct TODO above).
    return jnp.transpose(y, (0, 3, 1, 2))         # (B, 2*C, H/2, W/2)


def _reference(x_nchw, w_oihw):
    """Pure-JAX reference (lax conv + pixel-unshuffle) for correctness check."""
    y = jax.lax.conv_general_dilated(
        x_nchw, w_oihw, window_strides=(1, 1), padding=((1, 1), (1, 1)),
        dimension_numbers=("NCHW", "OIHW", "NCHW"))
    B, Cout, H, W = y.shape
    y = y.reshape(B, Cout, H // 2, 2, W // 2, 2)
    y = jnp.transpose(y, (0, 1, 3, 5, 2, 4))
    return y.reshape(B, Cout * 4, H // 2, W // 2)


if __name__ == "__main__":
    n_feat = 4
    B, H, W = 2, 16, 16

    key = jax.random.PRNGKey(0)
    kx, kw = jax.random.split(key)
    x = jax.random.normal(kx, (B, n_feat, H, W), dtype=jnp.float32)
    # Conv2d(n_feat, n_feat // 2, 3, bias=False) weight: (Cout, Cin, 3, 3)
    w = 0.1 * jax.random.normal(kw, (n_feat // 2, n_feat, 3, 3), dtype=jnp.float32)

    out = jax.jit(downsample)(x, w)
    out = jax.block_until_ready(out)

    ref = _reference(x, w)
    assert out.shape == (B, 2 * n_feat, H // 2, W // 2), out.shape
    # bf16 MXU path with f32 accumulation -> relaxed tolerance vs f32 reference.
    err = float(jnp.max(jnp.abs(out - ref)))
    assert jnp.allclose(out, ref, atol=5e-2, rtol=5e-2), f"mismatch, max |err|={err}"

    print("KERNEL_OK")
</pallas_src>

<mosaic_0001>
module attributes {stable_mosaic.version = 11 : i64} {
  func.func @_s2d_conv_strip_kernel(%arg0: i32, %arg1: i32, %arg2: memref<1x8x8x16xbf16, #tpu.memory_space<vmem>>, %arg3: memref<1x1x8x16xbf16, #tpu.memory_space<vmem>>, %arg4: memref<1x1x8x16xbf16, #tpu.memory_space<vmem>>, %arg5: memref<144x8xbf16, #tpu.memory_space<vmem>>, %arg6: memref<1x8x8x8xf32, #tpu.memory_space<vmem>>, %arg7: memref<10x10x16xbf16, #tpu.memory_space<vmem>>) attributes {dimension_semantics = [#tpu.dimension_semantics<parallel>, #tpu.dimension_semantics<parallel>], iteration_bounds = array<i64: 2, 1>, scalar_prefetch = 0 : i64, scratch_operands = 1 : i64, tpu.core_type = #tpu.core_type<tc>, window_params = [{transform_indices = @transform_0, window_bounds = array<i64: 1, 8, 8, 16>}, {transform_indices = @transform_1, window_bounds = array<i64: 1, 1, 8, 16>}, {transform_indices = @transform_2, window_bounds = array<i64: 1, 1, 8, 16>}, {pipeline_mode = #tpu.pipeline_mode<synchronous>, transform_indices = @transform_3, window_bounds = array<i64: 144, 8>}, {transform_indices = @transform_4, window_bounds = array<i64: 1, 8, 8, 8>}]} {
    %cst = arith.constant 0.000000e+00 : bf16
    %0 = vector.broadcast %cst : bf16 to vector<10x1x16xbf16>
    %c0 = arith.constant 0 : index
    %c0_0 = arith.constant 0 : index
    %c0_1 = arith.constant 0 : index
    %1 = vector.load %arg7[%c0, %c0_0, %c0_1] : memref<10x10x16xbf16, #tpu.memory_space<vmem>>, vector<10x1x16xbf16>
    tpu.vector_store %arg7[%c0, %c0_0, %c0_1], %0 {strides = array<i32>} : memref<10x10x16xbf16, #tpu.memory_space<vmem>>, vector<10x1x16xbf16>,
    %c0_2 = arith.constant 0 : index
    %c9 = arith.constant 9 : index
    %c0_3 = arith.constant 0 : index
    %2 = vector.load %arg7[%c0_2, %c9, %c0_3] : memref<10x10x16xbf16, #tpu.memory_space<vmem>>, vector<10x1x16xbf16>
    tpu.vector_store %arg7[%c0_2, %c9, %c0_3], %0 {strides = array<i32>} : memref<10x10x16xbf16, #tpu.memory_space<vmem>>, vector<10x1x16xbf16>,
    %c0_4 = arith.constant 0 : index
    %c0_5 = arith.constant 0 : index
    %c0_6 = arith.constant 0 : index
    %c0_7 = arith.constant 0 : index
    %3 = vector.load %arg2[%c0_4, %c0_5, %c0_6, %c0_7] : memref<1x8x8x16xbf16, #tpu.memory_space<vmem>>, vector<1x8x8x16xbf16>
    %4 = vector.shape_cast %3 : vector<1x8x8x16xbf16> to vector<8x8x16xbf16>
    %c1 = arith.constant 1 : index
    %c1_8 = arith.constant 1 : index
    %c0_9 = arith.constant 0 : index
    %5 = vector.load %arg7[%c1, %c1_8, %c0_9] : memref<10x10x16xbf16, #tpu.memory_space<vmem>>, vector<8x8x16xbf16>
    tpu.vector_store %arg7[%c1, %c1_8, %c0_9], %4 {strides = array<i32>} : memref<10x10x16xbf16, #tpu.memory_space<vmem>>, vector<8x8x16xbf16>,
    %c0_i32 = arith.constant 0 : i32
    %6 = arith.cmpi sgt, %arg1, %c0_i32 : i32
    %7 = arith.extui %6 : i1 to i32
    %c0_i32_10 = arith.constant 0 : i32
    %8 = arith.cmpi ne, %7, %c0_i32_10 : i32
    scf.if %8 {
      %c0_50 = arith.constant 0 : index
      %c0_51 = arith.constant 0 : index
      %c0_52 = arith.constant 0 : index
      %c0_53 = arith.constant 0 : index
      %35 = vector.load %arg3[%c0_50, %c0_51, %c0_52, %c0_53] : memref<1x1x8x16xbf16, #tpu.memory_space<vmem>>, vector<1x1x8x16xbf16>
      %36 = vector.shape_cast %35 : vector<1x1x8x16xbf16> to vector<1x8x16xbf16>
      %c0_54 = arith.constant 0 : index
      %c1_55 = arith.constant 1 : index
      %c0_56 = arith.constant 0 : index
      %37 = vector.load %arg7[%c0_54, %c1_55, %c0_56] : memref<10x10x16xbf16, #tpu.memory_space<vmem>>, vector<1x8x16xbf16>
      tpu.vector_store %arg7[%c0_54, %c1_55, %c0_56], %36 {strides = array<i32>} : memref<10x10x16xbf16, #tpu.memory_space<vmem>>, vector<1x8x16xbf16>,
    } else {
    }
    %c0_i32_11 = arith.constant 0 : i32
    %9 = arith.cmpi eq, %arg1, %c0_i32_11 : i32
    %10 = arith.extui %9 : i1 to i32
    %c0_i32_12 = arith.constant 0 : i32
    %11 = arith.cmpi ne, %10, %c0_i32_12 : i32
    scf.if %11 {
      %cst_50 = arith.constant 0.000000e+00 : bf16
      %35 = vector.broadcast %cst_50 : bf16 to vector<1x8x16xbf16>
      %c0_51 = arith.constant 0 : index
      %c1_52 = arith.constant 1 : index
      %c0_53 = arith.constant 0 : index
      %36 = vector.load %arg7[%c0_51, %c1_52, %c0_53] : memref<10x10x16xbf16, #tpu.memory_space<vmem>>, vector<1x8x16xbf16>
      tpu.vector_store %arg7[%c0_51, %c1_52, %c0_53], %35 {strides = array<i32>} : memref<10x10x16xbf16, #tpu.memory_space<vmem>>, vector<1x8x16xbf16>,
    } else {
    }
    %c0_i32_13 = arith.constant 0 : i32
    %12 = arith.cmpi slt, %arg1, %c0_i32_13 : i32
    %13 = arith.extui %12 : i1 to i32
    %c0_i32_14 = arith.constant 0 : i32
    %14 = arith.cmpi ne, %13, %c0_i32_14 : i32
    scf.if %14 {
      %c0_50 = arith.constant 0 : index
      %c0_51 = arith.constant 0 : index
      %c0_52 = arith.constant 0 : index
      %c0_53 = arith.constant 0 : index
      %35 = vector.load %arg4[%c0_50, %c0_51, %c0_52, %c0_53] : memref<1x1x8x16xbf16, #tpu.memory_space<vmem>>, vector<1x1x8x16xbf16>
      %36 = vector.shape_cast %35 : vector<1x1x8x16xbf16> to vector<1x8x16xbf16>
      %c9_54 = arith.constant 9 : index
      %c1_55 = arith.constant 1 : index
      %c0_56 = arith.constant 0 : index
      %37 = vector.load %arg7[%c9_54, %c1_55, %c0_56] : memref<10x10x16xbf16, #tpu.memory_space<vmem>>, vector<1x8x16xbf16>
      tpu.vector_store %arg7[%c9_54, %c1_55, %c0_56], %36 {strides = array<i32>} : memref<10x10x16xbf16, #tpu.memory_space<vmem>>, vector<1x8x16xbf16>,
    } else {
    }
    %c0_i32_15 = arith.constant 0 : i32
    %15 = arith.cmpi eq, %arg1, %c0_i32_15 : i32
    %16 = arith.extui %15 : i1 to i32
    %c0_i32_16 = arith.constant 0 : i32
    %17 = arith.cmpi ne, %16, %c0_i32_16 : i32
    scf.if %17 {
      %cst_50 = arith.constant 0.000000e+00 : bf16
      %35 = vector.broadcast %cst_50 : bf16 to vector<1x8x16xbf16>
      %c9_51 = arith.constant 9 : index
      %c1_52 = arith.constant 1 : index
      %c0_53 = arith.constant 0 : index
      %36 = vector.load %arg7[%c9_51, %c1_52, %c0_53] : memref<10x10x16xbf16, #tpu.memory_space<vmem>>, vector<1x8x16xbf16>
      tpu.vector_store %arg7[%c9_51, %c1_52, %c0_53], %35 {strides = array<i32>} : memref<10x10x16xbf16, #tpu.memory_space<vmem>>, vector<1x8x16xbf16>,
    } else {
    }
    %c0_17 = arith.constant 0 : index
    %c0_18 = arith.constant 0 : index
    %c0_19 = arith.constant 0 : index
    %18 = vector.load %arg7[%c0_17, %c0_18, %c0_19] : memref<10x10x16xbf16, #tpu.memory_space<vmem>>, vector<8x8x16xbf16>
    %c0_20 = arith.constant 0 : index
    %c1_21 = arith.constant 1 : index
    %c0_22 = arith.constant 0 : index
    %19 = vector.load %arg7[%c0_20, %c1_21, %c0_22] : memref<10x10x16xbf16, #tpu.memory_space<vmem>>, vector<8x8x16xbf16>
    %c0_23 = arith.constant 0 : index
    %c2 = arith.constant 2 : index
    %c0_24 = arith.constant 0 : index
    %20 = vector.load %arg7[%c0_23, %c2, %c0_24] : memref<10x10x16xbf16, #tpu.memory_space<vmem>>, vector<8x8x16xbf16>
    %c1_25 = arith.constant 1 : index
    %c0_26 = arith.constant 0 : index
    %c0_27 = arith.constant 0 : index
    %21 = vector.load %arg7[%c1_25, %c0_26, %c0_27] : memref<10x10x16xbf16, #tpu.memory_space<vmem>>, vector<8x8x16xbf16>
    %c1_28 = arith.constant 1 : index
    %c1_29 = arith.constant 1 : index
    %c0_30 = arith.constant 0 : index
    %22 = vector.load %arg7[%c1_28, %c1_29, %c0_30] : memref<10x10x16xbf16, #tpu.memory_space<vmem>>, vector<8x8x16xbf16>
    %c1_31 = arith.constant 1 : index
    %c2_32 = arith.constant 2 : index
    %c0_33 = arith.constant 0 : index
    %23 = vector.load %arg7[%c1_31, %c2_32, %c0_33] : memref<10x10x16xbf16, #tpu.memory_space<vmem>>, vector<8x8x16xbf16>
    %c2_34 = arith.constant 2 : index
    %c0_35 = arith.constant 0 : index
    %c0_36 = arith.constant 0 : index
    %24 = vector.load %arg7[%c2_34, %c0_35, %c0_36] : memref<10x10x16xbf16, #tpu.memory_space<vmem>>, vector<8x8x16xbf16>
    %c2_37 = arith.constant 2 : index
    %c1_38 = arith.constant 1 : index
    %c0_39 = arith.constant 0 : index
    %25 = vector.load %arg7[%c2_37, %c1_38, %c0_39] : memref<10x10x16xbf16, #tpu.memory_space<vmem>>, vector<8x8x16xbf16>
    %c2_40 = arith.constant 2 : index
    %c2_41 = arith.constant 2 : index
    %c0_42 = arith.constant 0 : index
    %26 = vector.load %arg7[%c2_40, %c2_41, %c0_42] : memref<10x10x16xbf16, #tpu.memory_space<vmem>>, vector<8x8x16xbf16>
    %27 = tpu.concatenate %18, %19, %20, %21, %22, %23, %24, %25, %26 in 2 : vector<8x8x16xbf16>, vector<8x8x16xbf16>, vector<8x8x16xbf16>, vector<8x8x16xbf16>, vector<8x8x16xbf16>, vector<8x8x16xbf16>, vector<8x8x16xbf16>, vector<8x8x16xbf16>, vector<8x8x16xbf16> -> vector<8x8x144xbf16>
    %28 = vector.shape_cast %27 : vector<8x8x144xbf16> to vector<64x144xbf16>
    %c0_43 = arith.constant 0 : index
    %c0_44 = arith.constant 0 : index
    %29 = vector.load %arg5[%c0_43, %c0_44] : memref<144x8xbf16, #tpu.memory_space<vmem>>, vector<144x8xbf16>
    %cst_45 = arith.constant dense<0.000000e+00> : vector<64x8xf32>
    %30 = tpu.matmul %28, %29, %cst_45 {dimension_numbers = #tpu.dot_dimension_numbers<[1], [0], [0], [1], [0, 0, 1, 1], [], []>} : vector<64x144xbf16>, vector<144x8xbf16>, vector<64x8xf32> -> vector<64x8xf32>
    %31 = vector.shape_cast %30 : vector<64x8xf32> to vector<8x8x8xf32>
    %c0_46 = arith.constant 0 : index
    %c0_47 = arith.constant 0 : index
    %c0_48 = arith.constant 0 : index
    %c0_49 = arith.constant 0 : index
    %32 = vector.load %arg6[%c0_46, %c0_47, %c0_48, %c0_49] : memref<1x8x8x8xf32, #tpu.memory_space<vmem>>, vector<1x8x8x8xf32>
    %33 = vector.shape_cast %32 : vector<1x8x8x8xf32> to vector<8x8x8xf32>
    %34 = vector.shape_cast %31 : vector<8x8x8xf32> to vector<1x8x8x8xf32>
    tpu.vector_store %arg6[%c0_46, %c0_47, %c0_48, %c0_49], %34 {strides = array<i32>} : memref<1x8x8x8xf32, #tpu.memory_space<vmem>>, vector<1x8x8x8xf32>,
    return
  }
  func.func @transform_0(%arg0: i32, %arg1: i32) -> (i32, i32, i32, i32) {
    %c0_i32 = arith.constant 0 : i32
    %c0_i32_0 = arith.constant 0 : i32
    %c0_i32_1 = arith.constant 0 : i32
    return %arg0, %arg1, %c0_i32, %c0_i32_0 : i32, i32, i32, i32
  }
  func.func @transform_1(%arg0: i32, %arg1: i32) -> (i32, i32, i32, i32) {
    %c8_i32 = arith.constant 8 : i32
    %0 = arith.muli %arg1, %c8_i32 : i32
    %c1_i32 = arith.constant 1 : i32
    %1 = arith.subi %0, %c1_i32 : i32
    %c0_i32 = arith.constant 0 : i32
    %2 = arith.maxsi %1, %c0_i32 : i32
    %c0_i32_0 = arith.constant 0 : i32
    %c0_i32_1 = arith.constant 0 : i32
    %c0_i32_2 = arith.constant 0 : i32
    return %arg0, %2, %c0_i32_0, %c0_i32_1 : i32, i32, i32, i32
  }
  func.func @transform_2(%arg0: i32, %arg1: i32) -> (i32, i32, i32, i32) {
    %c1_i32 = arith.constant 1 : i32
    %0 = arith.addi %arg1, %c1_i32 : i32
    %c8_i32 = arith.constant 8 : i32
    %1 = arith.muli %0, %c8_i32 : i32
    %c7_i32 = arith.constant 7 : i32
    %2 = arith.minsi %1, %c7_i32 : i32
    %c0_i32 = arith.constant 0 : i32
    %c0_i32_0 = arith.constant 0 : i32
    %c0_i32_1 = arith.constant 0 : i32
    return %arg0, %2, %c0_i32, %c0_i32_0 : i32, i32, i32, i32
  }
  func.func @transform_3(%arg0: i32, %arg1: i32) -> (i32, i32) {
    %c0_i32 = arith.constant 0 : i32
    %c0_i32_0 = arith.constant 0 : i32
    %c0_i32_1 = arith.constant 0 : i32
    return %c0_i32, %c0_i32_0 : i32, i32
  }
  func.func @transform_4(%arg0: i32, %arg1: i32) -> (i32, i32, i32, i32) {
    %c0_i32 = arith.constant 0 : i32
    %c0_i32_0 = arith.constant 0 : i32
    %c0_i32_1 = arith.constant 0 : i32
    return %arg0, %arg1, %c0_i32, %c0_i32_0 : i32, i32, i32, i32
  }
}

</mosaic_0001>

<llo_original>
// kernel: downsample.1
$region0: #{downsample.1}
  #allocation0 [shape = 'u32[]', space=smem, size = 0x4, offset = 0x4, fixed_abs, tag = 'smem constant byte address 0x4 - core index']
  #allocation1 [shape = 'u32[72,128]{1,0:T(1,128)}', space=vmem, size = 0x9000, scoped, tag = 'internal scratch']
  #allocation2 [shape = 'bf16[10,10,16]{2,1,0:T(8,128)(2,1)}', space=vmem, size = 0xa000, scoped, tag = 'scratch operand']
  %s0 = inlined_call_operand.vmem [shape: bf16[2,8,8,16], index: 0, kind: input, shape index: {}, may-alias: {0,1,2}]
  %s1 = inlined_call_operand.vmem [shape: bf16[2,8,8,16], index: 1, kind: input, shape index: {}, may-alias: {0,1,2}]
  %s2 = inlined_call_operand.vmem [shape: bf16[2,8,8,16], index: 2, kind: input, shape index: {}, may-alias: {0,1,2}]
  %s3 = inlined_call_operand.vmem [shape: bf16[144,8], index: 3, kind: input, shape index: {}]
  %s4 = inlined_call_operand.vmem [shape: f32[2,8,8,8], index: 4, kind: output, shape index: {}]
  %s5 = sld [smem:[#allocation0]]
  $region65: #{downsample.1} parent=0
    _
  %s7 = ssub.s32 1, %s5
  %s8 = scalar_select 0, %s7, %s5
  loop: start=0, step=1, limit=4
  $region2: #{downsample.1} parent=0 // loop_pre_header
    _
  $region3: #{downsample.1} parent=0 // loop_header
    %s10 = sphi 0, %s14
    %p11 = scmp.ge.s32.totalorder %s10, 4
    %s17 = sphi 0, %s29
    %s18 = sphi 0, %s25
    %s19 = sphi 0, %s17
    %s20 = sphi 0, %s18
    %s21 = sphi 0, %s19
    %s22 = sphi 0, %s20
    %s34 = sphi 0, %s36
    %s37 = sphi 0, %s34
    %s38 = sphi 0, %s37
    %s54 = sphi 0, %s38
    %s70 = sphi 0, %s72
    %s73 = sphi 0, %s70
    %s74 = sphi 0, %s73
    %s90 = sphi 0, %s74
    %s106 = sphi 0, %s108
    %s109 = sphi 0, %s106
    %s110 = sphi 0, %s109
    %s126 = sphi 0, %s110
    %s130 = sphi 0, %s130
    %s132 = sphi 0, %s130
    %s133 = sphi 0, %s132
    %s147 = sphi 0, %s133
    %s155 = sphi 0, %s157
    %s158 = sphi 0, %s155
    %s159 = sphi 0, %s158
    %s175 = sphi 0, %s159
  $region4: #{downsample.1} parent=0 // loop_header_branch
    %13 = sbr.rel (%p11) target = $region8
  $region5: #{downsample.1} parent=0 // loop_body
    %s15 = ssub.s32 %s10, 1
    %s16 = ssub.s32 %s10, 2
    %s23 = sadd.s32 1, %s18
    %p24 = scmp.ge.s32.totalorder %s23, 1
    %s25 = scalar_select %p24, 0, %s23
    %s26 = sadd.s32 1, %s17
    %s27 = scalar_select %p24, %s26, %s17
    %p28 = scmp.ge.s32.totalorder %s27, 2
    %s29 = scalar_select %p28, 0, %s27
    %s30 = ssub.s32 %s17, %s29
    %s31 = ssub.s32 %s18, %s25
    %s32 = sor.u32 %s30, %s31
    %p33 = scmp.eq.s32.totalorder %s32, 0
    %s35 = sadd.s32 %s34, 1
    %s36 = scalar_select %p33, %s34, %s35
    %p39 = pneg %p33
    %p40 = scmp.eq.s32.totalorder %s10, 1
    %p41 = por %p39, %p40
    %p42 = scmp.ne.s32.totalorder %s34, %s37
    %p43 = scmp.eq.s32.totalorder %s10, 0
    %p44 = por %p42, %p43
    %p45 = scmp.ne.s32.totalorder %s34, %s37
    %p46 = scmp.eq.s32.totalorder %s15, 1
    %p47 = por %p45, %p46
    %p48 = scmp.ne.s32.totalorder %s37, %s38
    %p49 = scmp.eq.s32.totalorder %s15, 0
    %p50 = por %p48, %p49
    %p51 = scmp.ne.s32.totalorder %s37, %s38
    %p52 = scmp.eq.s32.totalorder %s16, 1
    %p53 = por %p51, %p52
    %p55 = scmp.ne.s32.totalorder %s38, %s54
    %p56 = scmp.eq.s32.totalorder %s16, 0
    %p57 = por %p55, %p56
    %s58 = smul.u32 %s18, 8
    %s59 = ssub.s32 %s58, 1
    %p60 = scmp.gt.s32.totalorder %s59, 0
    %s61 = scalar_select %p60, %s59, 0
    %s62 = smul.u32 %s25, 8
    %s63 = ssub.s32 %s62, 1
    %p64 = scmp.gt.s32.totalorder %s63, 0
    %s65 = scalar_select %p64, %s63, 0
    %s66 = ssub.s32 %s17, %s29
    %s67 = ssub.s32 %s61, %s65
    %s68 = sor.u32 %s66, %s67
    %p69 = scmp.eq.s32.totalorder %s68, 0
    %s71 = sadd.s32 %s70, 1
    %s72 = scalar_select %p69, %s70, %s71
    %p75 = pneg %p69
    %p76 = scmp.eq.s32.totalorder %s10, 1
    %p77 = por %p75, %p76
    %p78 = scmp.ne.s32.totalorder %s70, %s73
    %p79 = scmp.eq.s32.totalorder %s10, 0
    %p80 = por %p78, %p79
    %p81 = scmp.ne.s32.totalorder %s70, %s73
    %p82 = scmp.eq.s32.totalorder %s15, 1
    %p83 = por %p81, %p82
    %p84 = scmp.ne.s32.totalorder %s73, %s74
    %p85 = scmp.eq.s32.totalorder %s15, 0
    %p86 = por %p84, %p85
    %p87 = scmp.ne.s32.totalorder %s73, %s74
    %p88 = scmp.eq.s32.totalorder %s16, 1
    %p89 = por %p87, %p88
    %p91 = scmp.ne.s32.totalorder %s74, %s90
    %p92 = scmp.eq.s32.totalorder %s16, 0
    %p93 = por %p91, %p92
    %s94 = sadd.s32 %s18, 1
    %s95 = smul.u32 %s94, 8
    %p96 = scmp.lt.s32.totalorder %s95, 7
    %s97 = scalar_select %p96, %s95, 7
    %s98 = sadd.s32 %s25, 1
    %s99 = smul.u32 %s98, 8
    %p100 = scmp.lt.s32.totalorder %s99, 7
    %s101 = scalar_select %p100, %s99, 7
    %s102 = ssub.s32 %s17, %s29
    %s103 = ssub.s32 %s97, %s101
    %s104 = sor.u32 %s102, %s103
    %p105 = scmp.eq.s32.totalorder %s104, 0
    %s107 = sadd.s32 %s106, 1
    %s108 = scalar_select %p105, %s106, %s107
    %p111 = pneg %p105
    %p112 = scmp.eq.s32.totalorder %s10, 1
    %p113 = por %p111, %p112
    %p114 = scmp.ne.s32.totalorder %s106, %s109
    %p115 = scmp.eq.s32.totalorder %s10, 0
    %p116 = por %p114, %p115
    %p117 = scmp.ne.s32.totalorder %s106, %s109
    %p118 = scmp.eq.s32.totalorder %s15, 1
    %p119 = por %p117, %p118
    %p120 = scmp.ne.s32.totalorder %s109, %s110
    %p121 = scmp.eq.s32.totalorder %s15, 0
    %p122 = por %p120, %p121
    %p123 = scmp.ne.s32.totalorder %s109, %s110
    %p124 = scmp.eq.s32.totalorder %s16, 1
    %p125 = por %p123, %p124
    %p127 = scmp.ne.s32.totalorder %s110, %s126
    %p128 = scmp.eq.s32.totalorder %s16, 0
    %p129 = por %p127, %p128
    %s131 = sadd.s32 %s130, 1
    %p134 = scmp.eq.s32.totalorder %s10, 1
    %p135 = scmp.ne.s32.totalorder %s130, %s132
    %p136 = scmp.eq.s32.totalorder %s10, 0
    %p137 = por %p135, %p136
    %p138 = scmp.ne.s32.totalorder %s130, %s132
    %p139 = scmp.eq.s32.totalorder %s15, 1
    %p140 = por %p138, %p139
    %p141 = scmp.ne.s32.totalorder %s132, %s133
    %p142 = scmp.eq.s32.totalorder %s15, 0
    %p143 = por %p141, %p142
    %p144 = scmp.ne.s32.totalorder %s132, %s133
    %p145 = scmp.eq.s32.totalorder %s16, 1
    %p146 = por %p144, %p145
    %p148 = scmp.ne.s32.totalorder %s133, %s147
    %p149 = scmp.eq.s32.totalorder %s16, 0
    %p150 = por %p148, %p149
    %s151 = ssub.s32 %s17, %s29
    %s152 = ssub.s32 %s18, %s25
    %s153 = sor.u32 %s151, %s152
    %p154 = scmp.eq.s32.totalorder %s153, 0
    %s156 = sadd.s32 %s155, 1
    %s157 = scalar_select %p154, %s155, %s156
    %p160 = pneg %p154
    %p161 = scmp.eq.s32.totalorder %s10, 1
    %p162 = por %p160, %p161
    %p163 = scmp.ne.s32.totalorder %s155, %s158
    %p164 = scmp.eq.s32.totalorder %s10, 0
    %p165 = por %p163, %p164
    %p166 = scmp.ne.s32.totalorder %s155, %s158
    %p167 = scmp.eq.s32.totalorder %s15, 1
    %p168 = por %p166, %p167
    %p169 = scmp.ne.s32.totalorder %s158, %s159
    %p170 = scmp.eq.s32.totalorder %s15, 0
    %p171 = por %p169, %p170
    %p172 = scmp.ne.s32.totalorder %s158, %s159
    %p173 = scmp.eq.s32.totalorder %s16, 1
    %p174 = por %p172, %p173
    %p176 = scmp.ne.s32.totalorder %s159, %s175
    %p177 = scmp.eq.s32.totalorder %s16, 0
    %p178 = por %p176, %p177
    %p179 = scmp.le.s32.totalorder 1, %s10
    %p180 = scmp.lt.s32.totalorder %s10, 3
    %p181 = pnand %p179, %p180
    %p182 = pneg %p181
    // Predicated region
    $region9: #{downsample.1} parent=5 // pred_check
      _
    $region10: #{downsample.1} parent=5 // pred_check_branch
      %184 = sbr.rel (%p181) target = $region12
    $region11: #{downsample.1} parent=5 // pred_region
      %s185 = ssub.s32 %s10, 1
      // Predicated region
      $region13: #{downsample.1} parent=11 // pred_check
        %p186 = pneg %p143
      $region14: #{downsample.1} parent=11 // pred_check_branch
        %188 = sbr.rel (%p186) target = $region16
      $region15: #{downsample.1} parent=11 // pred_region
        _
      $region16: #{downsample.1} parent=11 // pred_fallthru
        _
    $region12: #{downsample.1} parent=5 // pred_fallthru
      _
    %p189 = scmp.lt.s32.totalorder %s10, 2
    // Predicated region
    $region17: #{downsample.1} parent=5 // pred_check
      %p190 = pneg %p189
    $region18: #{downsample.1} parent=5 // pred_check_branch
      %192 = sbr.rel (%p190) target = $region20
    $region19: #{downsample.1} parent=5 // pred_region
      // Predicated region
      $region21: #{downsample.1} parent=19 // pred_check
        %p193 = pneg %p44
      $region22: #{downsample.1} parent=19 // pred_check_branch
        %195 = sbr.rel (%p193) target = $region24
      $region23: #{downsample.1} parent=19 // pred_region
        %s196 = smul.u32 8, %s18
        %p197 = scmp.lt.s32.totalorder %s17, 1
        %s198 = scalar_select %p197, %s17, 1
        %p199 = scmp.lt.s32.totalorder %s196, 7
        %s200 = scalar_select %p199, %s196, 7
        %s201 = smul.addr %s198, 8
        %s202 = sadd.s32 %s200, %s201
        %s203 = smul.addr %s202, 4
        %s204 = scalar_lea.vmem %s0, %s203
        %s205 = smul.u32 8, %s18
      $region24: #{downsample.1} parent=19 // pred_fallthru
        _
      // Predicated region
      $region25: #{downsample.1} parent=19 // pred_check
        %p206 = pneg %p80
      $region26: #{downsample.1} parent=19 // pred_check_branch
        %208 = sbr.rel (%p206) target = $region28
      $region27: #{downsample.1} parent=19 // pred_region
        %s209 = smul.u32 %s18, 8
        %s210 = ssub.s32 %s209, 1
        %p211 = scmp.gt.s32.totalorder %s210, 0
        %s212 = scalar_select %p211, %s210, 0
        %p213 = scmp.lt.s32.totalorder %s17, 1
        %s214 = scalar_select %p213, %s17, 1
        %p215 = scmp.lt.s32.totalorder %s212, 7
        %s216 = scalar_select %p215, %s212, 7
        %s217 = smul.addr %s214, 8
        %s218 = sadd.s32 %s216, %s217
        %s219 = smul.addr %s218, 4
        %s220 = scalar_lea.vmem %s1, %s219
        %s221 = smul.u32 %s18, 8
        %s222 = ssub.s32 %s221, 1
        %p223 = scmp.gt.s32.totalorder %s222, 0
        %s224 = scalar_select %p223, %s222, 0
      $region28: #{downsample.1} parent=19 // pred_fallthru
        _
      // Predicated region
      $region29: #{downsample.1} parent=19 // pred_check
        %p225 = pneg %p116
      $region30: #{downsample.1} parent=19 // pred_check_branch
        %227 = sbr.rel (%p225) target = $region32
      $region31: #{downsample.1} parent=19 // pred_region
        %s228 = sadd.s32 %s18, 1
        %s229 = smul.u32 %s228, 8
        %p230 = scmp.lt.s32.totalorder %s229, 7
        %s231 = scalar_select %p230, %s229, 7
        %p232 = scmp.lt.s32.totalorder %s17, 1
        %s233 = scalar_select %p232, %s17, 1
        %p234 = scmp.lt.s32.totalorder %s231, 7
        %s235 = scalar_select %p234, %s231, 7
        %s236 = smul.addr %s233, 8
        %s237 = sadd.s32 %s235, %s236
        %s238 = smul.addr %s237, 4
        %s239 = scalar_lea.vmem %s2, %s238
        %s240 = sadd.s32 %s18, 1
        %s241 = smul.u32 %s240, 8
        %p242 = scmp.lt.s32.totalorder %s241, 7
        %s243 = scalar_select %p242, %s241, 7
      $region32: #{downsample.1} parent=19 // pred_fallthru
        _
    $region20: #{downsample.1} parent=5 // pred_fallthru
      _
    %p244 = scmp.le.s32.totalorder 1, %s10
    %p245 = scmp.lt.s32.totalorder %s10, 3
    %p246 = pnand %p244, %p245
    %p247 = pneg %p246
    // Predicated region
    $region33: #{downsample.1} parent=5 // pred_check
      _
    $region34: #{downsample.1} parent=5 // pred_check_branch
      %249 = sbr.rel (%p246) target = $region36
    $region35: #{downsample.1} parent=5 // pred_region
      %s250 = ssub.s32 %s10, 1
      %s251 = smul.u32 8, %s20
      %p252 = scmp.lt.s32.totalorder %s19, 1
      %s253 = scalar_select %p252, %s19, 1
      %p254 = scmp.lt.s32.totalorder %s251, 7
      %s255 = scalar_select %p254, %s251, 7
      %s256 = smul.addr %s253, 8
      %s257 = sadd.s32 %s255, %s256
      %s258 = smul.addr %s257, 4
      %s259 = scalar_lea.vmem %s0, %s258
      %p260 = pneg %p50
      %p261 = pneg %p47
      %s262 = smul.u32 %s20, 8
      %s263 = ssub.s32 %s262, 1
      %p264 = scmp.gt.s32.totalorder %s263, 0
      %s265 = scalar_select %p264, %s263, 0
      %p266 = scmp.lt.s32.totalorder %s19, 1
      %s267 = scalar_select %p266, %s19, 1
      %p268 = scmp.lt.s32.totalorder %s265, 7
      %s269 = scalar_select %p268, %s265, 7
      %s270 = smul.addr %s267, 8
      %s271 = sadd.s32 %s269, %s270
      %s272 = smul.addr %s271, 4
      %s273 = scalar_lea.vmem %s1, %s272
      %p274 = pneg %p86
      %p275 = pneg %p83
      %s276 = sadd.s32 %s20, 1
      %s277 = smul.u32 %s276, 8
      %p278 = scmp.lt.s32.totalorder %s277, 7
      %s279 = scalar_select %p278, %s277, 7
      %p280 = scmp.lt.s32.totalorder %s19, 1
      %s281 = scalar_select %p280, %s19, 1
      %p282 = scmp.lt.s32.totalorder %s279, 7
      %s283 = scalar_select %p282, %s279, 7
      %s284 = smul.addr %s281, 8
      %s285 = sadd.s32 %s283, %s284
      %s286 = smul.addr %s285, 4
      %s287 = scalar_lea.vmem %s2, %s286
      %p288 = pneg %p122
      %p289 = pneg %p119
      %p290 = pneg %p143
      %p291 = pneg %p140
      %p292 = pneg %p171
      %p293 = pneg %p168
      %s294 = smul.u32 8, %s20
      %p295 = scmp.lt.s32.totalorder %s19, 1
      %s296 = scalar_select %p295, %s19, 1
      %p297 = scmp.lt.s32.totalorder %s294, 7
      %s298 = scalar_select %p297, %s294, 7
      %s299 = smul.addr %s296, 8
      %s300 = sadd.s32 %s298, %s299
      %s301 = smul.addr %s300, 8
      %s302 = scalar_lea.vmem %s4, %s301
      %s303 = smul.u32 8, %s20
      %p304 = scmp.lt.s32.totalorder %s19, 1
      %s305 = scalar_select %p304, %s19, 1
      %p306 = scmp.lt.s32.totalorder %s303, 7
      %s307 = scalar_select %p306, %s303, 7
      %s308 = smul.addr %s305, 8
      %s309 = sadd.s32 %s307, %s308
      %s310 = smul.addr %s309, 4
      %s311 = scalar_lea.vmem %s0, %s310
      %s312 = smul.u32 8, %s20
      %s313 = smul.u32 %s20, 8
      %s314 = ssub.s32 %s313, 1
      %p315 = scmp.gt.s32.totalorder %s314, 0
      %s316 = scalar_select %p315, %s314, 0
      %p317 = scmp.lt.s32.totalorder %s19, 1
      %s318 = scalar_select %p317, %s19, 1
      %p319 = scmp.lt.s32.totalorder %s316, 7
      %s320 = scalar_select %p319, %s316, 7
      %s321 = smul.addr %s318, 8
      %s322 = sadd.s32 %s320, %s321
      %s323 = smul.addr %s322, 4
      %s324 = scalar_lea.vmem %s1, %s323
      %s325 = smul.u32 %s20, 8
      %s326 = ssub.s32 %s325, 1
      %p327 = scmp.gt.s32.totalorder %s326, 0
      %s328 = scalar_select %p327, %s326, 0
      %s329 = sadd.s32 %s20, 1
      %s330 = smul.u32 %s329, 8
      %p331 = scmp.lt.s32.totalorder %s330, 7
      %s332 = scalar_select %p331, %s330, 7
      %p333 = scmp.lt.s32.totalorder %s19, 1
      %s334 = scalar_select %p333, %s19, 1
      %p335 = scmp.lt.s32.totalorder %s332, 7
      %s336 = scalar_select %p335, %s332, 7
      %s337 = smul.addr %s334, 8
      %s338 = sadd.s32 %s336, %s337
      %s339 = smul.addr %s338, 4
      %s340 = scalar_lea.vmem %s2, %s339
      %s341 = sadd.s32 %s20, 1
      %s342 = smul.u32 %s341, 8
      %p343 = scmp.lt.s32.totalorder %s342, 7
      %s344 = scalar_select %p343, %s342, 7
      %s345 = smul.u32 8, %s20
      %p346 = scmp.lt.s32.totalorder %s19, 1
      %s347 = scalar_select %p346, %s19, 1
      %p348 = scmp.lt.s32.totalorder %s345, 7
      %s349 = scalar_select %p348, %s345, 7
      %s350 = smul.addr %s347, 8
      %s351 = sadd.s32 %s349, %s350
      %s352 = smul.addr %s351, 8
      %s353 = scalar_lea.vmem %s4, %s352
      %s354 = smul.u32 8, %s20
      %vm356 = vcmask 122880
      %vm357 = vsmask.f32 256
      %vm358 = vmand %vm356, %vm357
      %v359 = vld [vmem:[#allocation2] sm:$0x1]
      %v360 = vsel %vm358, 0, %v359
      %361 = vst [vmem:[#allocation2] sm:$0x1] %v360
      %v362 = vld [vmem:[#allocation2 + $0x8] sm:$0x1]
      %v363 = vsel %vm358, 0, %v362
      %364 = vst [vmem:[#allocation2 + $0x8] sm:$0x1] %v363
      %v365 = vld [vmem:[#allocation2 + $0x10] sm:$0x1]
      %v366 = vsel %vm358, 0, %v365
      %367 = vst [vmem:[#allocation2 + $0x10] sm:$0x1] %v366
      %v368 = vld [vmem:[#allocation2 + $0x18] sm:$0x1]
      %v369 = vsel %vm358, 0, %v368
      %370 = vst [vmem:[#allocation2 + $0x18] sm:$0x1] %v369
      %v371 = vld [vmem:[#allocation2 + $0x20] sm:$0x1]
      %v372 = vsel %vm358, 0, %v371
      %373 = vst [vmem:[#allocation2 + $0x20] sm:$0x1] %v372
      %v374 = vld [vmem:[#allocation2 + $0x28] sm:$0x1]
      %v375 = vsel %vm358, 0, %v374
      %376 = vst [vmem:[#allocation2 + $0x28] sm:$0x1] %v375
      %v377 = vld [vmem:[#allocation2 + $0x30] sm:$0x1]
      %v378 = vsel %vm358, 0, %v377
      %379 = vst [vmem:[#allocation2 + $0x30] sm:$0x1] %v378
      %v380 = vld [vmem:[#allocation2 + $0x38] sm:$0x1]
      %v381 = vsel %vm358, 0, %v380
      %382 = vst [vmem:[#allocation2 + $0x38] sm:$0x1] %v381
      %v383 = vld [vmem:[#allocation2 + $0x40] sm:$0x1]
      %v384 = vsel %vm358, 0, %v383
      %385 = vst [vmem:[#allocation2 + $0x40] sm:$0x1] %v384
      %v386 = vld [vmem:[#allocation2 + $0x48] sm:$0x1]
      %v387 = vsel %vm358, 0, %v386
      %388 = vst [vmem:[#allocation2 + $0x48] sm:$0x1] %v387
      %vm389 = vsmask.f32 7938
      %vm390 = vmand %vm356, %vm389
      %v391 = vld [vmem:[#allocation2 + $0x4] sm:$0x1]
      %v392 = vsel %vm390, 0, %v391
      %393 = vst [vmem:[#allocation2 + $0x4] sm:$0x1] %v392
      %v394 = vld [vmem:[#allocation2 + $0xc] sm:$0x1]
      %v395 = vsel %vm390, 0, %v394
      %396 = vst [vmem:[#allocation2 + $0xc] sm:$0x1] %v395
      %v397 = vld [vmem:[#allocation2 + $0x14] sm:$0x1]
      %v398 = vsel %vm390, 0, %v397
      %399 = vst [vmem:[#allocation2 + $0x14] sm:$0x1] %v398
      %v400 = vld [vmem:[#allocation2 + $0x1c] sm:$0x1]
      %v401 = vsel %vm390, 0, %v400
      %402 = vst [vmem:[#allocation2 + $0x1c] sm:$0x1] %v401
      %v403 = vld [vmem:[#allocation2 + $0x24] sm:$0x1]
      %v404 = vsel %vm390, 0, %v403
      %405 = vst [vmem:[#allocation2 + $0x24] sm:$0x1] %v404
      %v406 = vld [vmem:[#allocation2 + $0x2c] sm:$0x1]
      %v407 = vsel %vm390, 0, %v406
      %408 = vst [vmem:[#allocation2 + $0x2c] sm:$0x1] %v407
      %v409 = vld [vmem:[#allocation2 + $0x34] sm:$0x1]
      %v410 = vsel %vm390, 0, %v409
      %411 = vst [vmem:[#allocation2 + $0x34] sm:$0x1] %v410
      %v412 = vld [vmem:[#allocation2 + $0x3c] sm:$0x1]
      %v413 = vsel %vm390, 0, %v412
      %414 = vst [vmem:[#allocation2 + $0x3c] sm:$0x1] %v413
      %v415 = vld [vmem:[#allocation2 + $0x44] sm:$0x1]
      %v416 = vsel %vm390, 0, %v415
      %417 = vst [vmem:[#allocation2 + $0x44] sm:$0x1] %v416
      %v418 = vld [vmem:[#allocation2 + $0x4c] sm:$0x1]
      %v419 = vsel %vm390, 0, %v418
      %420 = vst [vmem:[#allocation2 + $0x4c] sm:$0x1] %v419
      %v421 = vld [vmem:[%s311] sm:$0xf]
      %v422 = vld [vmem:[%s311 + $0x4] sm:$0xf]
      %v423 = vld [vmem:[%s311 + $0x8] sm:$0xf]
      %v424 = vld [vmem:[%s311 + $0xc] sm:$0xf]
      %v425 = vld [vmem:[%s311 + $0x10] sm:$0xf]
      %v426 = vld [vmem:[%s311 + $0x14] sm:$0xf]
      %v427 = vld [vmem:[%s311 + $0x18] sm:$0xf]
      %v428 = vld [vmem:[%s311 + $0x1c] sm:$0xf]
      %v430 = vshrl.u32 %v421, 16
      %v432 = vrot.slane %v430, 7
      %v433 = vshll.u32 %v421, 16
      %v435 = vor.u32 %v432, %v433
      %v436 = vrot.slane %v432, 4
      %v438 = vshrl.u32 %v422, 16
      %v440 = vrot.slane %v438, 7
      %v441 = vshll.u32 %v422, 16
      %v443 = vor.u32 %v440, %v441
      %v444 = vrot.slane %v440, 4
      %v446 = vshrl.u32 %v423, 16
      %v448 = vrot.slane %v446, 7
      %v449 = vshll.u32 %v423, 16
      %v451 = vor.u32 %v448, %v449
      %v452 = vrot.slane %v448, 4
      %v454 = vshrl.u32 %v424, 16
      %v456 = vrot.slane %v454, 7
      %v457 = vshll.u32 %v424, 16
      %v459 = vor.u32 %v456, %v457
      %v460 = vrot.slane %v456, 4
      %v462 = vshrl.u32 %v425, 16
      %v464 = vrot.slane %v462, 7
      %v465 = vshll.u32 %v425, 16
      %v467 = vor.u32 %v464, %v465
      %v468 = vrot.slane %v464, 4
      %v470 = vshrl.u32 %v426, 16
      %v472 = vrot.slane %v470, 7
      %v473 = vshll.u32 %v426, 16
      %v475 = vor.u32 %v472, %v473
      %v476 = vrot.slane %v472, 4
      %v478 = vshrl.u32 %v427, 16
      %v480 = vrot.slane %v478, 7
      %v481 = vshll.u32 %v427, 16
      %v483 = vor.u32 %v480, %v481
      %v484 = vrot.slane %v480, 4
      %v486 = vshrl.u32 %v428, 16
      %v488 = vrot.slane %v486, 7
      %v489 = vshll.u32 %v428, 16
      %v491 = vor.u32 %v488, %v489
      %v492 = vrot.slane %v488, 4
      %s509 = scalar_lea.vmem [#allocation2], 8
      %vm510 = vcmask 125952
      %vm511 = vmand %vm510, %vm389
      %v512 = vld [vmem:[%s509] sm:$0xf]
      %v513 = vsel %vm511, %v435, %v512
      %514 = vst [vmem:[%s509] sm:$0xf] %v513
      %v515 = vld [vmem:[%s509 + $0x4] sm:$0x1]
      %v516 = vsel %vm358, %v436, %v515
      %517 = vst [vmem:[%s509 + $0x4] sm:$0x1] %v516
      %v518 = vld [vmem:[%s509 + $0x8] sm:$0xf]
      %v519 = vsel %vm511, %v443, %v518
      %520 = vst [vmem:[%s509 + $0x8] sm:$0xf] %v519
      %v521 = vld [vmem:[%s509 + $0xc] sm:$0x1]
      %v522 = vsel %vm358, %v444, %v521
      %523 = vst [vmem:[%s509 + $0xc] sm:$0x1] %v522
      %v524 = vld [vmem:[%s509 + $0x10] sm:$0xf]
      %v525 = vsel %vm511, %v451, %v524
      %526 = vst [vmem:[%s509 + $0x10] sm:$0xf] %v525
      %v527 = vld [vmem:[%s509 + $0x14] sm:$0x1]
      %v528 = vsel %vm358, %v452, %v527
      %529 = vst [vmem:[%s509 + $0x14] sm:$0x1] %v528
      %v530 = vld [vmem:[%s509 + $0x18] sm:$0xf]
      %v531 = vsel %vm511, %v459, %v530
      %532 = vst [vmem:[%s509 + $0x18] sm:$0xf] %v531
      %v533 = vld [vmem:[%s509 + $0x1c] sm:$0x1]
      %v534 = vsel %vm358, %v460, %v533
      %535 = vst [vmem:[%s509 + $0x1c] sm:$0x1] %v534
      %v536 = vld [vmem:[%s509 + $0x20] sm:$0xf]
      %v537 = vsel %vm511, %v467, %v536
      %538 = vst [vmem:[%s509 + $0x20] sm:$0xf] %v537
      %v539 = vld [vmem:[%s509 + $0x24] sm:$0x1]
      %v540 = vsel %vm358, %v468, %v539
      %541 = vst [vmem:[%s509 + $0x24] sm:$0x1] %v540
      %v542 = vld [vmem:[%s509 + $0x28] sm:$0xf]
      %v543 = vsel %vm511, %v475, %v542
      %544 = vst [vmem:[%s509 + $0x28] sm:$0xf] %v543
      %v545 = vld [vmem:[%s509 + $0x2c] sm:$0x1]
      %v546 = vsel %vm358, %v476, %v545
      %547 = vst [vmem:[%s509 + $0x2c] sm:$0x1] %v546
      %v548 = vld [vmem:[%s509 + $0x30] sm:$0xf]
      %v549 = vsel %vm511, %v483, %v548
      %550 = vst [vmem:[%s509 + $0x30] sm:$0xf] %v549
      %v551 = vld [vmem:[%s509 + $0x34] sm:$0x1]
      %v552 = vsel %vm358, %v484, %v551
      %553 = vst [vmem:[%s509 + $0x34] sm:$0x1] %v552
      %v554 = vld [vmem:[%s509 + $0x38] sm:$0xf]
      %v555 = vsel %vm511, %v491, %v554
      %556 = vst [vmem:[%s509 + $0x38] sm:$0xf] %v555
      %v557 = vld [vmem:[%s509 + $0x3c] sm:$0x1]
      %v558 = vsel %vm358, %v492, %v557
      %559 = vst [vmem:[%s509 + $0x3c] sm:$0x1] %v558
      %p560 = scmp.gt.s32.totalorder %s20, 0
      // Predicated region
      $region37: #{downsample.1} parent=35 // pred_check
        %p561 = pneg %p560
      $region38: #{downsample.1} parent=35 // pred_check_branch
        %563 = sbr.rel (%p561) target = $region40
      $region39: #{downsample.1} parent=35 // pred_region
        %v564 = vld [vmem:[%s324] sm:$0xf]
        %v566 = vshrl.u32 %v564, 16
        %v568 = vrot.slane %v566, 7
        %v569 = vshll.u32 %v564, 16
        %v571 = vor.u32 %v568, %v569
        %v572 = vrot.slane %v568, 4
        %v575 = vld [vmem:[#allocation2] sm:$0xf]
        %v576 = vsel %vm511, %v571, %v575
        %577 = vst [vmem:[#allocation2] sm:$0xf] %v576
        %v578 = vld [vmem:[#allocation2 + $0x4] sm:$0x1]
        %v579 = vsel %vm358, %v572, %v578
        %580 = vst [vmem:[#allocation2 + $0x4] sm:$0x1] %v579
      $region40: #{downsample.1} parent=35 // pred_fallthru
        _
      %p581 = scmp.eq.s32.totalorder %s20, 0
      // Predicated region
      $region41: #{downsample.1} parent=35 // pred_check
        %p582 = pneg %p581
      $region42: #{downsample.1} parent=35 // pred_check_branch
        %584 = sbr.rel (%p582) target = $region44
      $region43: #{downsample.1} parent=35 // pred_region
        %v585 = vld [vmem:[#allocation2] sm:$0xf]
        %v586 = vsel %vm511, 0, %v585
        %587 = vst [vmem:[#allocation2] sm:$0xf] %v586
        %v588 = vld [vmem:[#allocation2 + $0x4] sm:$0x1]
        %v589 = vsel %vm358, 0, %v588
        %590 = vst [vmem:[#allocation2 + $0x4] sm:$0x1] %v589
      $region44: #{downsample.1} parent=35 // pred_fallthru
        _
      %p591 = scmp.lt.s32.totalorder %s20, 0
      // Predicated region
      $region45: #{downsample.1} parent=35 // pred_check
        %p592 = pneg %p591
      $region46: #{downsample.1} parent=35 // pred_check_branch
        %594 = sbr.rel (%p592) target = $region48
      $region47: #{downsample.1} parent=35 // pred_region
        %v595 = vld [vmem:[%s340] sm:$0xf]
        %v597 = vshrl.u32 %v595, 16
        %v599 = vrot.slane %v597, 7
        %v600 = vshll.u32 %v595, 16
        %v602 = vor.u32 %v599, %v600
        %v603 = vrot.slane %v599, 4
        %s606 = scalar_lea.vmem [#allocation2], 72
        %v607 = vld [vmem:[%s606] sm:$0xf]
        %v608 = vsel %vm511, %v602, %v607
        %609 = vst [vmem:[%s606] sm:$0xf] %v608
        %v610 = vld [vmem:[%s606 + $0x4] sm:$0x1]
        %v611 = vsel %vm358, %v603, %v610
        %612 = vst [vmem:[%s606 + $0x4] sm:$0x1] %v611
      $region48: #{downsample.1} parent=35 // pred_fallthru
        _
      // Predicated region
      $region49: #{downsample.1} parent=35 // pred_check
        %p613 = pneg %p581
      $region50: #{downsample.1} parent=35 // pred_check_branch
        %615 = sbr.rel (%p613) target = $region52
      $region51: #{downsample.1} parent=35 // pred_region
        %s616 = scalar_lea.vmem [#allocation2], 72
        %v617 = vld [vmem:[%s616] sm:$0xf]
        %v618 = vsel %vm511, 0, %v617
        %619 = vst [vmem:[%s616] sm:$0xf] %v618
        %v620 = vld [vmem:[%s616 + $0x4] sm:$0x1]
        %v621 = vsel %vm358, 0, %v620
        %622 = vst [vmem:[%s616 + $0x4] sm:$0x1] %v621
      $region52: #{downsample.1} parent=35 // pred_fallthru
        _
      %v623 = vld [vmem:[#allocation2] sm:$0xf]
      %v624 = vld [vmem:[#allocation2 + $0x8] sm:$0xf]
      %v625 = vld [vmem:[#allocation2 + $0x10] sm:$0xf]
      %v626 = vld [vmem:[#allocation2 + $0x18] sm:$0xf]
      %v627 = vld [vmem:[#allocation2 + $0x20] sm:$0xf]
      %v628 = vld [vmem:[#allocation2 + $0x28] sm:$0xf]
      %v629 = vld [vmem:[#allocation2 + $0x30] sm:$0xf]
      %v630 = vld [vmem:[#allocation2 + $0x38] sm:$0xf]
      %v631 = vld [vmem:[#allocation2 + $0x4] sm:$0x1]
      %v632 = vld [vmem:[#allocation2 + $0xc] sm:$0x1]
      %v633 = vld [vmem:[#allocation2 + $0x14] sm:$0x1]
      %v634 = vld [vmem:[#allocation2 + $0x1c] sm:$0x1]
      %v635 = vld [vmem:[#allocation2 + $0x24] sm:$0x1]
      %v636 = vld [vmem:[#allocation2 + $0x2c] sm:$0x1]
      %v637 = vld [vmem:[#allocation2 + $0x34] sm:$0x1]
      %v638 = vld [vmem:[#allocation2 + $0x3c] sm:$0x1]
      %v639 = vld [vmem:[#allocation2] sm:$0xe]
      %v640 = vld [vmem:[#allocation2 + $0x8] sm:$0xe]
      %v641 = vld [vmem:[#allocation2 + $0x10] sm:$0xe]
      %v642 = vld [vmem:[#allocation2 + $0x18] sm:$0xe]
      %v643 = vld [vmem:[#allocation2 + $0x20] sm:$0xe]
      %v644 = vld [vmem:[#allocation2 + $0x28] sm:$0xe]
      %v645 = vld [vmem:[#allocation2 + $0x30] sm:$0xe]
      %v646 = vld [vmem:[#allocation2 + $0x38] sm:$0xe]
      %v647 = vld [vmem:[%s509] sm:$0xf]
      %v648 = vld [vmem:[%s509 + $0x8] sm:$0xf]
      %v649 = vld [vmem:[%s509 + $0x10] sm:$0xf]
      %v650 = vld [vmem:[%s509 + $0x18] sm:$0xf]
      %v651 = vld [vmem:[%s509 + $0x20] sm:$0xf]
      %v652 = vld [vmem:[%s509 + $0x28] sm:$0xf]
      %v653 = vld [vmem:[%s509 + $0x30] sm:$0xf]
      %v654 = vld [vmem:[%s509 + $0x38] sm:$0xf]
      %v655 = vld [vmem:[%s509 + $0x4] sm:$0x1]
      %v656 = vld [vmem:[%s509 + $0xc] sm:$0x1]
      %v657 = vld [vmem:[%s509 + $0x14] sm:$0x1]
      %v658 = vld [vmem:[%s509 + $0x1c] sm:$0x1]
      %v659 = vld [vmem:[%s509 + $0x24] sm:$0x1]
      %v660 = vld [vmem:[%s509 + $0x2c] sm:$0x1]
      %v661 = vld [vmem:[%s509 + $0x34] sm:$0x1]
      %v662 = vld [vmem:[%s509 + $0x3c] sm:$0x1]
      %v663 = vld [vmem:[%s509] sm:$0xe]
      %v664 = vld [vmem:[%s509 + $0x8] sm:$0xe]
      %v665 = vld [vmem:[%s509 + $0x10] sm:$0xe]
      %v666 = vld [vmem:[%s509 + $0x18] sm:$0xe]
      %v667 = vld [vmem:[%s509 + $0x20] sm:$0xe]
      %v668 = vld [vmem:[%s509 + $0x28] sm:$0xe]
      %v669 = vld [vmem:[%s509 + $0x30] sm:$0xe]
      %v670 = vld [vmem:[%s509 + $0x38] sm:$0xe]
      %s671 = scalar_lea.vmem [#allocation2], 16
      %v672 = vld [vmem:[%s671] sm:$0xf]
      %v673 = vld [vmem:[%s671 + $0x8] sm:$0xf]
      %v674 = vld [vmem:[%s671 + $0x10] sm:$0xf]
      %v675 = vld [vmem:[%s671 + $0x18] sm:$0xf]
      %v676 = vld [vmem:[%s671 + $0x20] sm:$0xf]
      %v677 = vld [vmem:[%s671 + $0x28] sm:$0xf]
      %v678 = vld [vmem:[%s671 + $0x30] sm:$0xf]
      %v679 = vld [vmem:[%s671 + $0x38] sm:$0xf]
      %v680 = vld [vmem:[%s671 + $0x4] sm:$0x1]
      %v681 = vld [vmem:[%s671 + $0xc] sm:$0x1]
      %v682 = vld [vmem:[%s671 + $0x14] sm:$0x1]
      %v683 = vld [vmem:[%s671 + $0x1c] sm:$0x1]
      %v684 = vld [vmem:[%s671 + $0x24] sm:$0x1]
      %v685 = vld [vmem:[%s671 + $0x2c] sm:$0x1]
      %v686 = vld [vmem:[%s671 + $0x34] sm:$0x1]
      %v687 = vld [vmem:[%s671 + $0x3c] sm:$0x1]
      %v688 = vld [vmem:[%s671] sm:$0xe]
      %v689 = vld [vmem:[%s671 + $0x8] sm:$0xe]
      %v690 = vld [vmem:[%s671 + $0x10] sm:$0xe]
      %v691 = vld [vmem:[%s671 + $0x18] sm:$0xe]
      %v692 = vld [vmem:[%s671 + $0x20] sm:$0xe]
      %v693 = vld [vmem:[%s671 + $0x28] sm:$0xe]
      %v694 = vld [vmem:[%s671 + $0x30] sm:$0xe]
      %v695 = vld [vmem:[%s671 + $0x38] sm:$0xe]
      %v712 = vunpack.c.l.b16 %v623
      %v713 = vunpack.c.l.b16 %v631
      %v714 = vunpack.c.l.b16 %v624
      %v715 = vunpack.c.l.b16 %v632
      %v716 = vunpack.c.l.b16 %v625
      %v717 = vunpack.c.l.b16 %v633
      %v718 = vunpack.c.l.b16 %v626
      %v719 = vunpack.c.l.b16 %v634
      %v720 = vunpack.c.l.b16 %v627
      %v721 = vunpack.c.l.b16 %v635
      %v722 = vunpack.c.l.b16 %v628
      %v723 = vunpack.c.l.b16 %v636
      %v724 = vunpack.c.l.b16 %v629
      %v725 = vunpack.c.l.b16 %v637
      %v726 = vunpack.c.l.b16 %v630
      %v727 = vunpack.c.l.b16 %v638
      %v728 = vpack.c.b16 %v713, %v712
      %v729 = vpack.c.b16 %v715, %v714
      %v730 = vpack.c.b16 %v717, %v716
      %v731 = vpack.c.b16 %v719, %v718
      %v732 = vpack.c.b16 %v721, %v720
      %v733 = vpack.c.b16 %v723, %v722
      %v734 = vpack.c.b16 %v725, %v724
      %v735 = vpack.c.b16 %v727, %v726
      %v737 = vshrl.u32 %v728, 16
      %v739 = vshll.u32 %v728, 16
      %v741 = vrot.slane %v739, 1
      %v742 = vor.u32 %v737, %v741
      %v744 = vshrl.u32 %v729, 16
      %v746 = vshll.u32 %v729, 16
      %v748 = vrot.slane %v746, 1
      %v749 = vor.u32 %v744, %v748
      %v751 = vshrl.u32 %v730, 16
      %v753 = vshll.u32 %v730, 16
      %v755 = vrot.slane %v753, 1
      %v756 = vor.u32 %v751, %v755
      %v758 = vshrl.u32 %v731, 16
      %v760 = vshll.u32 %v731, 16
      %v762 = vrot.slane %v760, 1
      %v763 = vor.u32 %v758, %v762
      %v765 = vshrl.u32 %v732, 16
      %v767 = vshll.u32 %v732, 16
      %v769 = vrot.slane %v767, 1
      %v770 = vor.u32 %v765, %v769
      %v772 = vshrl.u32 %v733, 16
      %v774 = vshll.u32 %v733, 16
      %v776 = vrot.slane %v774, 1
      %v777 = vor.u32 %v772, %v776
      %v779 = vshrl.u32 %v734, 16
      %v781 = vshll.u32 %v734, 16
      %v783 = vrot.slane %v781, 1
      %v784 = vor.u32 %v779, %v783
      %v786 = vshrl.u32 %v735, 16
      %v788 = vshll.u32 %v735, 16
      %v790 = vrot.slane %v788, 1
      %v791 = vor.u32 %v786, %v790
      %792 = vrot.lane.b32.xlu0 %v742, 16
      %v793 = vpop.permute.xlu0 %792
      %794 = vrot.lane.b32.xlu0 %v749, 16
      %v795 = vpop.permute.xlu0 %794
      %796 = vrot.lane.b32.xlu0 %v756, 16
      %v797 = vpop.permute.xlu0 %796
      %798 = vrot.lane.b32.xlu0 %v763, 16
      %v799 = vpop.permute.xlu0 %798
      %800 = vrot.lane.b32.xlu0 %v770, 16
      %v801 = vpop.permute.xlu0 %800
      %802 = vrot.lane.b32.xlu0 %v777, 16
      %v803 = vpop.permute.xlu0 %802
      %804 = vrot.lane.b32.xlu0 %v784, 16
      %v805 = vpop.permute.xlu0 %804
      %806 = vrot.lane.b32.xlu0 %v791, 16
      %v807 = vpop.permute.xlu0 %806
      %v816 = vunpack.c.l.b16 %v639
      %v817 = vunpack.c.l.b16 %v640
      %v818 = vunpack.c.l.b16 %v641
      %v819 = vunpack.c.l.b16 %v642
      %v820 = vunpack.c.l.b16 %v643
      %v821 = vunpack.c.l.b16 %v644
      %v822 = vunpack.c.l.b16 %v645
      %v823 = vunpack.c.l.b16 %v646
      %v824 = vpack.c.b16 %v713, %v816
      %v825 = vpack.c.b16 %v715, %v817
      %v826 = vpack.c.b16 %v717, %v818
      %v827 = vpack.c.b16 %v719, %v819
      %v828 = vpack.c.b16 %v721, %v820
      %v829 = vpack.c.b16 %v723, %v821
      %v830 = vpack.c.b16 %v725, %v822
      %v831 = vpack.c.b16 %v727, %v823
      %v832 = vrot.slane %v824, 1
      %v833 = vrot.slane %v825, 1
      %v834 = vrot.slane %v826, 1
      %v835 = vrot.slane %v827, 1
      %v836 = vrot.slane %v828, 1
      %v837 = vrot.slane %v829, 1
      %v838 = vrot.slane %v830, 1
      %v839 = vrot.slane %v831, 1
      %840 = vrot.lane.b32.xlu0 %v832, 32
      %v841 = vpop.permute.xlu0 %840
      %842 = vrot.lane.b32.xlu0 %v833, 32
      %v843 = vpop.permute.xlu0 %842
      %844 = vrot.lane.b32.xlu0 %v834, 32
      %v845 = vpop.permute.xlu0 %844
      %846 = vrot.lane.b32.xlu0 %v835, 32
      %v847 = vpop.permute.xlu0 %846
      %848 = vrot.lane.b32.xlu0 %v836, 32
      %v849 = vpop.permute.xlu0 %848
      %850 = vrot.lane.b32.xlu0 %v837, 32
      %v851 = vpop.permute.xlu0 %850
      %852 = vrot.lane.b32.xlu0 %v838, 32
      %v853 = vpop.permute.xlu0 %852
      %854 = vrot.lane.b32.xlu0 %v839, 32
      %v855 = vpop.permute.xlu0 %854
      %v864 = vunpack.c.l.b16 %v647
      %v865 = vunpack.c.l.b16 %v648
      %v866 = vunpack.c.l.b16 %v649
      %v867 = vunpack.c.l.b16 %v650
      %v868 = vunpack.c.l.b16 %v651
      %v869 = vunpack.c.l.b16 %v652
      %v870 = vunpack.c.l.b16 %v653
      %v871 = vunpack.c.l.b16 %v654
      %v872 = vpack.c.b16 %v864, %v864
      %v873 = vpack.c.b16 %v865, %v865
      %v874 = vpack.c.b16 %v866, %v866
      %v875 = vpack.c.b16 %v867, %v867
      %v876 = vpack.c.b16 %v868, %v868
      %v877 = vpack.c.b16 %v869, %v869
      %v878 = vpack.c.b16 %v870, %v870
      %v879 = vpack.c.b16 %v871, %v871
      %880 = vrot.lane.b32.xlu0 %v872, 48
      %v881 = vpop.permute.xlu0 %880
      %882 = vrot.lane.b32.xlu0 %v873, 48
      %v883 = vpop.permute.xlu0 %882
      %884 = vrot.lane.b32.xlu0 %v874, 48
      %v885 = vpop.permute.xlu0 %884
      %886 = vrot.lane.b32.xlu0 %v875, 48
      %v887 = vpop.permute.xlu0 %886
      %888 = vrot.lane.b32.xlu0 %v876, 48
      %v889 = vpop.permute.xlu0 %888
      %890 = vrot.lane.b32.xlu0 %v877, 48
      %v891 = vpop.permute.xlu0 %890
      %892 = vrot.lane.b32.xlu0 %v878, 48
      %v893 = vpop.permute.xlu0 %892
      %894 = vrot.lane.b32.xlu0 %v879, 48
      %v895 = vpop.permute.xlu0 %894
      %v904 = vunpack.c.l.b16 %v655
      %v905 = vunpack.c.l.b16 %v656
      %v906 = vunpack.c.l.b16 %v657
      %v907 = vunpack.c.l.b16 %v658
      %v908 = vunpack.c.l.b16 %v659
      %v909 = vunpack.c.l.b16 %v660
      %v910 = vunpack.c.l.b16 %v661
      %v911 = vunpack.c.l.b16 %v662
      %v912 = vpack.c.b16 %v904, %v864
      %v913 = vpack.c.b16 %v905, %v865
      %v914 = vpack.c.b16 %v906, %v866
      %v915 = vpack.c.b16 %v907, %v867
      %v916 = vpack.c.b16 %v908, %v868
      %v917 = vpack.c.b16 %v909, %v869
      %v918 = vpack.c.b16 %v910, %v870
      %v919 = vpack.c.b16 %v911, %v871
      %v921 = vshrl.u32 %v912, 16
      %v923 = vshll.u32 %v912, 16
      %v925 = vrot.slane %v923, 1
      %v926 = vor.u32 %v921, %v925
      %v928 = vshrl.u32 %v913, 16
      %v930 = vshll.u32 %v913, 16
      %v932 = vrot.slane %v930, 1
      %v933 = vor.u32 %v928, %v932
      %v935 = vshrl.u32 %v914, 16
      %v937 = vshll.u32 %v914, 16
      %v939 = vrot.slane %v937, 1
      %v940 = vor.u32 %v935, %v939
      %v942 = vshrl.u32 %v915, 16
      %v944 = vshll.u32 %v915, 16
      %v946 = vrot.slane %v944, 1
      %v947 = vor.u32 %v942, %v946
      %v949 = vshrl.u32 %v916, 16
      %v951 = vshll.u32 %v916, 16
      %v953 = vrot.slane %v951, 1
      %v954 = vor.u32 %v949, %v953
      %v956 = vshrl.u32 %v917, 16
      %v958 = vshll.u32 %v917, 16
      %v960 = vrot.slane %v958, 1
      %v961 = vor.u32 %v956, %v960
      %v963 = vshrl.u32 %v918, 16
      %v965 = vshll.u32 %v918, 16
      %v967 = vrot.slane %v965, 1
      %v968 = vor.u32 %v963, %v967
      %v970 = vshrl.u32 %v919, 16
      %v972 = vshll.u32 %v919, 16
      %v974 = vrot.slane %v972, 1
      %v975 = vor.u32 %v970, %v974
      %976 = vrot.lane.b32.xlu0 %v926, 64
      %v977 = vpop.permute.xlu0 %976
      %978 = vrot.lane.b32.xlu0 %v933, 64
      %v979 = vpop.permute.xlu0 %978
      %980 = vrot.lane.b32.xlu0 %v940, 64
      %v981 = vpop.permute.xlu0 %980
      %982 = vrot.lane.b32.xlu0 %v947, 64
      %v983 = vpop.permute.xlu0 %982
      %984 = vrot.lane.b32.xlu0 %v954, 64
      %v985 = vpop.permute.xlu0 %984
      %986 = vrot.lane.b32.xlu0 %v961, 64
      %v987 = vpop.permute.xlu0 %986
      %988 = vrot.lane.b32.xlu0 %v968, 64
      %v989 = vpop.permute.xlu0 %988
      %990 = vrot.lane.b32.xlu0 %v975, 64
      %v991 = vpop.permute.xlu0 %990
      %v1000 = vunpack.c.l.b16 %v663
      %v1001 = vunpack.c.l.b16 %v664
      %v1002 = vunpack.c.l.b16 %v665
      %v1003 = vunpack.c.l.b16 %v666
      %v1004 = vunpack.c.l.b16 %v667
      %v1005 = vunpack.c.l.b16 %v668
      %v1006 = vunpack.c.l.b16 %v669
      %v1007 = vunpack.c.l.b16 %v670
      %v1008 = vpack.c.b16 %v904, %v1000
      %v1009 = vpack.c.b16 %v905, %v1001
      %v1010 = vpack.c.b16 %v906, %v1002
      %v1011 = vpack.c.b16 %v907, %v1003
      %v1012 = vpack.c.b16 %v908, %v1004
      %v1013 = vpack.c.b16 %v909, %v1005
      %v1014 = vpack.c.b16 %v910, %v1006
      %v1015 = vpack.c.b16 %v911, %v1007
      %v1016 = vrot.slane %v1008, 1
      %v1017 = vrot.slane %v1009, 1
      %v1018 = vrot.slane %v1010, 1
      %v1019 = vrot.slane %v1011, 1
      %v1020 = vrot.slane %v1012, 1
      %v1021 = vrot.slane %v1013, 1
      %v1022 = vrot.slane %v1014, 1
      %v1023 = vrot.slane %v1015, 1
      %1024 = vrot.lane.b32.xlu0 %v1016, 80
      %v1025 = vpop.permute.xlu0 %1024
      %1026 = vrot.lane.b32.xlu0 %v1017, 80
      %v1027 = vpop.permute.xlu0 %1026
      %1028 = vrot.lane.b32.xlu0 %v1018, 80
      %v1029 = vpop.permute.xlu0 %1028
      %1030 = vrot.lane.b32.xlu0 %v1019, 80
      %v1031 = vpop.permute.xlu0 %1030
      %1032 = vrot.lane.b32.xlu0 %v1020, 80
      %v1033 = vpop.permute.xlu0 %1032
      %1034 = vrot.lane.b32.xlu0 %v1021, 80
      %v1035 = vpop.permute.xlu0 %1034
      %1036 = vrot.lane.b32.xlu0 %v1022, 80
      %v1037 = vpop.permute.xlu0 %1036
      %1038 = vrot.lane.b32.xlu0 %v1023, 80
      %v1039 = vpop.permute.xlu0 %1038
      %v1048 = vunpack.c.l.b16 %v672
      %v1049 = vunpack.c.l.b16 %v673
      %v1050 = vunpack.c.l.b16 %v674
      %v1051 = vunpack.c.l.b16 %v675
      %v1052 = vunpack.c.l.b16 %v676
      %v1053 = vunpack.c.l.b16 %v677
      %v1054 = vunpack.c.l.b16 %v678
      %v1055 = vunpack.c.l.b16 %v679
      %v1056 = vpack.c.b16 %v1048, %v1048
      %v1057 = vpack.c.b16 %v1049, %v1049
      %v1058 = vpack.c.b16 %v1050, %v1050
      %v1059 = vpack.c.b16 %v1051, %v1051
      %v1060 = vpack.c.b16 %v1052, %v1052
      %v1061 = vpack.c.b16 %v1053, %v1053
      %v1062 = vpack.c.b16 %v1054, %v1054
      %v1063 = vpack.c.b16 %v1055, %v1055
      %1064 = vrot.lane.b32.xlu0 %v1056, 96
      %v1065 = vpop.permute.xlu0 %1064
      %1066 = vrot.lane.b32.xlu0 %v1057, 96
      %v1067 = vpop.permute.xlu0 %1066
      %1068 = vrot.lane.b32.xlu0 %v1058, 96
      %v1069 = vpop.permute.xlu0 %1068
      %1070 = vrot.lane.b32.xlu0 %v1059, 96
      %v1071 = vpop.permute.xlu0 %1070
      %1072 = vrot.lane.b32.xlu0 %v1060, 96
      %v1073 = vpop.permute.xlu0 %1072
      %1074 = vrot.lane.b32.xlu0 %v1061, 96
      %v1075 = vpop.permute.xlu0 %1074
      %1076 = vrot.lane.b32.xlu0 %v1062, 96
      %v1077 = vpop.permute.xlu0 %1076
      %1078 = vrot.lane.b32.xlu0 %v1063, 96
      %v1079 = vpop.permute.xlu0 %1078
      %v1088 = vunpack.c.l.b16 %v680
      %v1089 = vunpack.c.l.b16 %v681
      %v1090 = vunpack.c.l.b16 %v682
      %v1091 = vunpack.c.l.b16 %v683
      %v1092 = vunpack.c.l.b16 %v684
      %v1093 = vunpack.c.l.b16 %v685
      %v1094 = vunpack.c.l.b16 %v686
      %v1095 = vunpack.c.l.b16 %v687
      %v1096 = vpack.c.b16 %v1088, %v1048
      %v1097 = vpack.c.b16 %v1089, %v1049
      %v1098 = vpack.c.b16 %v1090, %v1050
      %v1099 = vpack.c.b16 %v1091, %v1051
      %v1100 = vpack.c.b16 %v1092, %v1052
      %v1101 = vpack.c.b16 %v1093, %v1053
      %v1102 = vpack.c.b16 %v1094, %v1054
      %v1103 = vpack.c.b16 %v1095, %v1055
      %v1105 = vshrl.u32 %v1096, 16
      %v1107 = vshll.u32 %v1096, 16
      %v1109 = vrot.slane %v1107, 1
      %v1110 = vor.u32 %v1105, %v1109
      %v1112 = vshrl.u32 %v1097, 16
      %v1114 = vshll.u32 %v1097, 16
      %v1116 = vrot.slane %v1114, 1
      %v1117 = vor.u32 %v1112, %v1116
      %v1119 = vshrl.u32 %v1098, 16
      %v1121 = vshll.u32 %v1098, 16
      %v1123 = vrot.slane %v1121, 1
      %v1124 = vor.u32 %v1119, %v1123
      %v1126 = vshrl.u32 %v1099, 16
      %v1128 = vshll.u32 %v1099, 16
      %v1130 = vrot.slane %v1128, 1
      %v1131 = vor.u32 %v1126, %v1130
      %v1133 = vshrl.u32 %v1100, 16
      %v1135 = vshll.u32 %v1100, 16
      %v1137 = vrot.slane %v1135, 1
      %v1138 = vor.u32 %v1133, %v1137
      %v1140 = vshrl.u32 %v1101, 16
      %v1142 = vshll.u32 %v1101, 16
      %v1144 = vrot.slane %v1142, 1
      %v1145 = vor.u32 %v1140, %v1144
      %v1147 = vshrl.u32 %v1102, 16
      %v1149 = vshll.u32 %v1102, 16
      %v1151 = vrot.slane %v1149, 1
      %v1152 = vor.u32 %v1147, %v1151
      %v1154 = vshrl.u32 %v1103, 16
      %v1156 = vshll.u32 %v1103, 16
      %v1158 = vrot.slane %v1156, 1
      %v1159 = vor.u32 %v1154, %v1158
      %1160 = vrot.lane.b32.xlu0 %v1110, 112
      %v1161 = vpop.permute.xlu0 %1160
      %1162 = vrot.lane.b32.xlu0 %v1117, 112
      %v1163 = vpop.permute.xlu0 %1162
      %1164 = vrot.lane.b32.xlu0 %v1124, 112
      %v1165 = vpop.permute.xlu0 %1164
      %1166 = vrot.lane.b32.xlu0 %v1131, 112
      %v1167 = vpop.permute.xlu0 %1166
      %1168 = vrot.lane.b32.xlu0 %v1138, 112
      %v1169 = vpop.permute.xlu0 %1168
      %1170 = vrot.lane.b32.xlu0 %v1145, 112
      %v1171 = vpop.permute.xlu0 %1170
      %1172 = vrot.lane.b32.xlu0 %v1152, 112
      %v1173 = vpop.permute.xlu0 %1172
      %1174 = vrot.lane.b32.xlu0 %v1159, 112
      %v1175 = vpop.permute.xlu0 %1174
      %v1184 = vunpack.c.l.b16 %v688
      %v1185 = vunpack.c.l.b16 %v689
      %v1186 = vunpack.c.l.b16 %v690
      %v1187 = vunpack.c.l.b16 %v691
      %v1188 = vunpack.c.l.b16 %v692
      %v1189 = vunpack.c.l.b16 %v693
      %v1190 = vunpack.c.l.b16 %v694
      %v1191 = vunpack.c.l.b16 %v695
      %v1192 = vpack.c.b16 %v1088, %v1184
      %v1193 = vpack.c.b16 %v1089, %v1185
      %v1194 = vpack.c.b16 %v1090, %v1186
      %v1195 = vpack.c.b16 %v1091, %v1187
      %v1196 = vpack.c.b16 %v1092, %v1188
      %v1197 = vpack.c.b16 %v1093, %v1189
      %v1198 = vpack.c.b16 %v1094, %v1190
      %v1199 = vpack.c.b16 %v1095, %v1191
      %v1200 = vrot.slane %v1192, 1
      %v1201 = vrot.slane %v1193, 1
      %v1202 = vrot.slane %v1194, 1
      %v1203 = vrot.slane %v1195, 1
      %v1204 = vrot.slane %v1196, 1
      %v1205 = vrot.slane %v1197, 1
      %v1206 = vrot.slane %v1198, 1
      %v1207 = vrot.slane %v1199, 1
      %vm1208 = vcmask 130048
      %v1211 = vsel %vm1208, %v623, %v793
      %v1214 = vsel %vm1208, %v624, %v795
      %v1217 = vsel %vm1208, %v625, %v797
      %v1220 = vsel %vm1208, %v626, %v799
      %v1223 = vsel %vm1208, %v627, %v801
      %v1226 = vsel %vm1208, %v628, %v803
      %v1229 = vsel %vm1208, %v629, %v805
      %v1232 = vsel %vm1208, %v630, %v807
      %vm1233 = vcmask 261120
      %v1235 = vsel %vm1233, %v1211, %v841
      %v1237 = vsel %vm1233, %v1214, %v843
      %v1239 = vsel %vm1233, %v1217, %v845
      %v1241 = vsel %vm1233, %v1220, %v847
      %v1243 = vsel %vm1233, %v1223, %v849
      %v1245 = vsel %vm1233, %v1226, %v851
      %v1247 = vsel %vm1233, %v1229, %v853
      %v1249 = vsel %vm1233, %v1232, %v855
      %vm1250 = vcmask 392192
      %v1252 = vsel %vm1250, %v1235, %v881
      %v1254 = vsel %vm1250, %v1237, %v883
      %v1256 = vsel %vm1250, %v1239, %v885
      %v1258 = vsel %vm1250, %v1241, %v887
      %v1260 = vsel %vm1250, %v1243, %v889
      %v1262 = vsel %vm1250, %v1245, %v891
      %v1264 = vsel %vm1250, %v1247, %v893
      %v1266 = vsel %vm1250, %v1249, %v895
      %vm1267 = vcmask 523264
      %v1269 = vsel %vm1267, %v1252, %v977
      %v1271 = vsel %vm1267, %v1254, %v979
      %v1273 = vsel %vm1267, %v1256, %v981
      %v1275 = vsel %vm1267, %v1258, %v983
      %v1277 = vsel %vm1267, %v1260, %v985
      %v1279 = vsel %vm1267, %v1262, %v987
      %v1281 = vsel %vm1267, %v1264, %v989
      %v1283 = vsel %vm1267, %v1266, %v991
      %vm1284 = vcmask 654336
      %v1286 = vsel %vm1284, %v1269, %v1025
      %v1288 = vsel %vm1284, %v1271, %v1027
      %v1290 = vsel %vm1284, %v1273, %v1029
      %v1292 = vsel %vm1284, %v1275, %v1031
      %v1294 = vsel %vm1284, %v1277, %v1033
      %v1296 = vsel %vm1284, %v1279, %v1035
      %v1298 = vsel %vm1284, %v1281, %v1037
      %v1300 = vsel %vm1284, %v1283, %v1039
      %vm1301 = vcmask 785408
      %v1303 = vsel %vm1301, %v1286, %v1065
      %v1305 = vsel %vm1301, %v1288, %v1067
      %v1307 = vsel %vm1301, %v1290, %v1069
      %v1309 = vsel %vm1301, %v1292, %v1071
      %v1311 = vsel %vm1301, %v1294, %v1073
      %v1313 = vsel %vm1301, %v1296, %v1075
      %v1315 = vsel %vm1301, %v1298, %v1077
      %v1317 = vsel %vm1301, %v1300, %v1079
      %vm1318 = vcmask 916480
      %v1320 = vsel %vm1318, %v1303, %v1161
      %v1322 = vsel %vm1318, %v1305, %v1163
      %v1324 = vsel %vm1318, %v1307, %v1165
      %v1326 = vsel %vm1318, %v1309, %v1167
      %v1328 = vsel %vm1318, %v1311, %v1169
      %v1330 = vsel %vm1318, %v1313, %v1171
      %v1332 = vsel %vm1318, %v1315, %v1173
      %v1334 = vsel %vm1318, %v1317, %v1175
      %v1343 = vunpack.c.l.b16 %v1320
      %v1344 = vunpack.c.l.b16 %v1200
      %v1345 = vunpack.c.l.b16 %v1322
      %v1346 = vunpack.c.l.b16 %v1201
      %v1347 = vunpack.c.l.b16 %v1324
      %v1348 = vunpack.c.l.b16 %v1202
      %v1349 = vunpack.c.l.b16 %v1326
      %v1350 = vunpack.c.l.b16 %v1203
      %v1351 = vunpack.c.l.b16 %v1328
      %v1352 = vunpack.c.l.b16 %v1204
      %v1353 = vunpack.c.l.b16 %v1330
      %v1354 = vunpack.c.l.b16 %v1205
      %v1355 = vunpack.c.l.b16 %v1332
      %v1356 = vunpack.c.l.b16 %v1206
      %v1357 = vunpack.c.l.b16 %v1334
      %v1358 = vunpack.c.l.b16 %v1207
      %v1359 = vld [vmem:[%s3] sm:$0xf]
      %v1360 = vld [vmem:[%s3 + $0x4] sm:$0xf]
      %v1361 = vld [vmem:[%s3 + $0x8] sm:$0xf]
      %v1362 = vld [vmem:[%s3 + $0xc] sm:$0xf]
      %v1363 = vld [vmem:[%s3 + $0x10] sm:$0xf]
      %v1364 = vld [vmem:[%s3 + $0x14] sm:$0xf]
      %v1365 = vld [vmem:[%s3 + $0x18] sm:$0xf]
      %v1366 = vld [vmem:[%s3 + $0x1c] sm:$0xf]
      %v1367 = vld [vmem:[%s3 + $0x20] sm:$0xf]
      %v1368 = vld [vmem:[%s3 + $0x24] sm:$0xf]
      %v1369 = vld [vmem:[%s3 + $0x28] sm:$0xf]
      %v1370 = vld [vmem:[%s3 + $0x2c] sm:$0xf]
      %v1371 = vld [vmem:[%s3 + $0x30] sm:$0xf]
      %v1372 = vld [vmem:[%s3 + $0x34] sm:$0xf]
      %v1373 = vld [vmem:[%s3 + $0x38] sm:$0xf]
      %v1374 = vld [vmem:[%s3 + $0x3c] sm:$0xf]
      %v1375 = vld [vmem:[%s3 + $0x40] sm:$0xf]
      %v1376 = vld [vmem:[%s3 + $0x44] sm:$0xf]
      %v1377 = vpack.c.b16 %v1345, %v1343
      %v1378 = vpack.c.b16 %v1346, %v1344
      %v1379 = vpack.c.b16 %v1349, %v1347
      %v1380 = vpack.c.b16 %v1350, %v1348
      %v1381 = vpack.c.b16 %v1353, %v1351
      %v1382 = vpack.c.b16 %v1354, %v1352
      %v1383 = vpack.c.b16 %v1357, %v1355
      %v1384 = vpack.c.b16 %v1358, %v1356
      %v1407 = vunpack.c.l.b16 %v1359
      %v1408 = vunpack.c.l.b16 %v1360
      %v1409 = vunpack.c.l.b16 %v1361
      %v1410 = vunpack.c.l.b16 %v1362
      %v1411 = vunpack.c.l.b16 %v1363
      %v1412 = vunpack.c.l.b16 %v1364
      %v1413 = vunpack.c.l.b16 %v1365
      %v1414 = vunpack.c.l.b16 %v1366
      %v1415 = vunpack.c.l.b16 %v1367
      %v1416 = vunpack.c.l.b16 %v1368
      %v1417 = vunpack.c.l.b16 %v1369
      %v1418 = vunpack.c.l.b16 %v1370
      %v1419 = vunpack.c.l.b16 %v1371
      %v1420 = vunpack.c.l.b16 %v1372
      %v1421 = vunpack.c.l.b16 %v1373
      %v1422 = vunpack.c.l.b16 %v1374
      %v1423 = vunpack.c.l.b16 %v1375
      %v1424 = vunpack.c.l.b16 %v1376
      %v1425 = vpack.c.b16 %v1408, %v1407
      %v1426 = vpack.c.b16 %v1410, %v1409
      %v1427 = vpack.c.b16 %v1412, %v1411
      %v1428 = vpack.c.b16 %v1414, %v1413
      %v1429 = vpack.c.b16 %v1416, %v1415
      %v1430 = vpack.c.b16 %v1418, %v1417
      %v1431 = vpack.c.b16 %v1420, %v1419
      %v1432 = vpack.c.b16 %v1422, %v1421
      %v1433 = vpack.c.b16 %v1424, %v1423
      %v1444 = vsel %vm1208, %v1378, 0
      %v1447 = vsel %vm1208, %v1380, 0
      %v1450 = vsel %vm1208, %v1382, 0
      %v1453 = vsel %vm1208, %v1384, 0
      %1455 = vmatpush.bf16.msra.mxu0 %v1432
      %1456 = vmatpush.bf16.msra.mxu0 %v1431
      %1457 = vmatpush.bf16.msra.mxu0 %v1430
      %1458 = vmatpush.bf16.msra.mxu0 %v1429
      %1459 = vmatpush.bf16.msra.mxu0 %v1428
      %1460 = vmatpush.bf16.msra.mxu0 %v1427
      %1461 = vmatpush.bf16.msra.mxu0 %v1426
      %1462 = vmatpush.bf16.msra.mxu0 %v1425
      %1463 = vmatmul.bf16.gmra.mxu0 %v1377
      %v1464 = vpop.f32.mrf.mxu0
      %v1465 = vadd.f32 0.0, %v1464
      %v1466 = vpop.f32.mrf.mxu0
      %v1467 = vadd.f32 0.0, %v1466
      %1468 = vmatmul.bf16.gmra.mxu0 %v1379
      %v1469 = vpop.f32.mrf.mxu0
      %v1470 = vadd.f32 0.0, %v1469
      %v1471 = vpop.f32.mrf.mxu0
      %v1472 = vadd.f32 0.0, %v1471
      %1473 = vmatmul.bf16.gmra.mxu0 %v1381
      %v1474 = vpop.f32.mrf.mxu0
      %v1475 = vadd.f32 0.0, %v1474
      %v1476 = vpop.f32.mrf.mxu0
      %v1477 = vadd.f32 0.0, %v1476
      %1478 = vmatmul.bf16.gmra.mxu0 %v1383
      %v1479 = vpop.f32.mrf.mxu0
      %v1480 = vadd.f32 0.0, %v1479
      %v1481 = vpop.f32.mrf.mxu0
      %v1482 = vadd.f32 0.0, %v1481
      %1483 = vdwg.mxu0
      %1484 = vmatpush.bf16.msra.mxu0 0
      %1485 = vmatpush.bf16.msra.mxu0 0
      %1486 = vmatpush.bf16.msra.mxu0 0
      %1487 = vmatpush.bf16.msra.mxu0 0
      %1488 = vmatpush.bf16.msra.mxu0 0
      %1489 = vmatpush.bf16.msra.mxu0 0
      %1490 = vmatpush.bf16.msra.mxu0 0
      %1491 = vmatpush.bf16.msra.mxu0 %v1433
      %1492 = vmatmul.bf16.gmra.mxu0 %v1444
      %v1493 = vpop.f32.mrf.mxu0
      %v1494 = vadd.f32 %v1465, %v1493
      %v1495 = vpop.f32.mrf.mxu0
      %v1496 = vadd.f32 %v1467, %v1495
      %1497 = vmatmul.bf16.gmra.mxu0 %v1447
      %v1498 = vpop.f32.mrf.mxu0
      %v1499 = vadd.f32 %v1470, %v1498
      %v1500 = vpop.f32.mrf.mxu0
      %v1501 = vadd.f32 %v1472, %v1500
      %1502 = vmatmul.bf16.gmra.mxu0 %v1450
      %v1503 = vpop.f32.mrf.mxu0
      %v1504 = vadd.f32 %v1475, %v1503
      %v1505 = vpop.f32.mrf.mxu0
      %v1506 = vadd.f32 %v1477, %v1505
      %1507 = vmatmul.bf16.gmra.mxu0 %v1453
      %v1508 = vpop.f32.mrf.mxu0
      %v1509 = vadd.f32 %v1480, %v1508
      %v1510 = vpop.f32.mrf.mxu0
      %v1511 = vadd.f32 %v1482, %v1510
      %1512 = vdwg.mxu0
      %vm1513 = vcmask 64512
      %1514 = vst.msk [vmem:[%s353] sm:$0xff] %vm1513, %v1494
      %1515 = vst.msk [vmem:[%s353 + $0x8] sm:$0xff] %vm1513, %v1496
      %1516 = vst.msk [vmem:[%s353 + $0x10] sm:$0xff] %vm1513, %v1499
      %1517 = vst.msk [vmem:[%s353 + $0x18] sm:$0xff] %vm1513, %v1501
      %1518 = vst.msk [vmem:[%s353 + $0x20] sm:$0xff] %vm1513, %v1504
      %1519 = vst.msk [vmem:[%s353 + $0x28] sm:$0xff] %vm1513, %v1506
      %1520 = vst.msk [vmem:[%s353 + $0x30] sm:$0xff] %vm1513, %v1509
      %1521 = vst.msk [vmem:[%s353 + $0x38] sm:$0xff] %vm1513, %v1511
      %s1522 = smul.u32 8, %s20
      %p1523 = scmp.lt.s32.totalorder %s19, 1
      %s1524 = scalar_select %p1523, %s19, 1
      %p1525 = scmp.lt.s32.totalorder %s1522, 7
      %s1526 = scalar_select %p1525, %s1522, 7
      %s1527 = smul.addr %s1524, 8
      %s1528 = sadd.s32 %s1526, %s1527
      %s1529 = smul.addr %s1528, 8
      %s1530 = scalar_lea.vmem %s4, %s1529
      // Predicated region
      $region53: #{downsample.1} parent=35 // pred_check
        %p1531 = pneg %p168
      $region54: #{downsample.1} parent=35 // pred_check_branch
        %1533 = sbr.rel (%p1531) target = $region56
      $region55: #{downsample.1} parent=35 // pred_region
        %s1534 = smul.u32 8, %s20
      $region56: #{downsample.1} parent=35 // pred_fallthru
        _
    $region36: #{downsample.1} parent=5 // pred_fallthru
      _
    %p1535 = scmp.le.s32.totalorder 2, %s10
    // Predicated region
    $region57: #{downsample.1} parent=5 // pred_check
      %p1536 = pneg %p1535
    $region58: #{downsample.1} parent=5 // pred_check_branch
      %1538 = sbr.rel (%p1536) target = $region60
    $region59: #{downsample.1} parent=5 // pred_region
      %s1539 = ssub.s32 %s10, 2
      // Predicated region
      $region61: #{downsample.1} parent=59 // pred_check
        %p1540 = pneg %p174
      $region62: #{downsample.1} parent=59 // pred_check_branch
        %1542 = sbr.rel (%p1540) target = $region64
      $region63: #{downsample.1} parent=59 // pred_region
        %s1543 = smul.u32 8, %s22
        %p1544 = scmp.lt.s32.totalorder %s21, 1
        %s1545 = scalar_select %p1544, %s21, 1
        %p1546 = scmp.lt.s32.totalorder %s1543, 7
        %s1547 = scalar_select %p1546, %s1543, 7
        %s1548 = smul.addr %s1545, 8
        %s1549 = sadd.s32 %s1547, %s1548
        %s1550 = smul.addr %s1549, 8
        %s1551 = scalar_lea.vmem %s4, %s1550
      $region64: #{downsample.1} parent=59 // pred_fallthru
        _
    $region60: #{downsample.1} parent=5 // pred_fallthru
      _
  $region6: #{downsample.1} parent=0 // loop_footer
    %s14 = sadd.s32 1, %s10
  $region7: #{downsample.1} parent=0 // loop_footer_branch
    %9 = sbr.rel target = $region3
  $region8: #{downsample.1} parent=0 // loop_exit
    _

</llo_original>
